<compile_context>
chip_gen: v7x
topology: tpu7x:2x2x1
jax: 0.10.0
libtpu: 0.0.40
codegen_flags: <defaults>
</compile_context>

<pallas_src>
import numpy as np
import jax
import jax.numpy as jnp
from jax.experimental import pallas as pl
from jax.experimental.pallas import tpu as pltpu


def _deconv_kernel(x_ref, w_ref, b_ref, o_ref, xpad_ref):
    # x_ref   : (Bblk, H, W, Ci)      bf16 channel-last input slices (depth folded into batch)
    # w_ref   : (9*Ci, 4*Co)          bf16 tap-fused weights (rows: 3x3 shift x Ci, cols: parity x Co)
    # b_ref   : (1, W*4*Co)           f32 bias pre-tiled over (w, r, c)
    # o_ref   : (Bblk, H, W*4*Co)     lane-dense parity-packed output slab
    # xpad_ref: (Bblk, H+2, W+2, Ci)  bf16 VMEM scratch holding the 1-pixel zero halo
    Bblk, H, W, Ci = x_ref.shape
    Co4 = w_ref.shape[1]

    # Zero only the 1-pixel border frame (cheap; correct regardless of grid scheduling),
    # then drop the unpadded block into the interior.
    zrow = jnp.zeros((Bblk, 1, W + 2, Ci), dtype=xpad_ref.dtype)
    zcol = jnp.zeros((Bblk, H + 2, 1, Ci), dtype=xpad_ref.dtype)
    xpad_ref[:, 0:1, :, :] = zrow
    xpad_ref[:, H + 1:H + 2, :, :] = zrow
    xpad_ref[:, :, 0:1, :] = zcol
    xpad_ref[:, :, W + 1:W + 2, :] = zcol
    xpad_ref[:, 1:H + 1, 1:W + 1, :] = x_ref[...]
    xp = xpad_ref[...]                                      # (Bblk, H+2, W+2, Ci) bf16

    # im2col over the 3x3 shift neighbourhood, built directly in bf16 (no f32 copy).
    patches = [xp[:, 1 + s:1 + s + H, 1 + t:1 + t + W, :]
               for s in (-1, 0, 1) for t in (-1, 0, 1)]
    xs = jnp.concatenate(patches, axis=-1).reshape(Bblk * H * W, 9 * Ci)

    # One fused MXU matmul computes all 16 taps / 4 output parities (f32 accumulation).
    acc = jnp.dot(xs, w_ref[...], preferred_element_type=jnp.float32)    # (M, 4*Co)

    # Repack to a lane-dense slab so the store is a single unmasked dense write.
    acc4 = acc.reshape(Bblk, H, W, Co4)                     # splits leading dims only (cheap)
    slab = jnp.concatenate([acc4[:, :, w, :] for w in range(W)], axis=-1)  # (Bblk, H, W*4*Co)

    out = jnp.maximum(slab + b_ref[...], 0.0)               # bias + ReLU on dense 256-wide rows
    o_ref[...] = out.astype(o_ref.dtype)


def _rnd(x, m):
    return ((x + m - 1) // m) * m


def _per_slice_vmem_bytes(H, W, Ci, Co, out_bytes):
    """Rough tile-padded VMEM bytes needed per batch*depth slice (for block sizing)."""
    lane, sub = 128, 8
    in_buf = H * _rnd(W, sub) * _rnd(Ci, lane) * 2                 # bf16 input block
    halo = (H + 2) * _rnd(W + 2, sub) * _rnd(Ci, lane) * 2         # bf16 halo scratch
    im2col = 2 * H * W * _rnd(9 * Ci, lane) * 2                    # bf16 patches (+relayout copy)
    acc = H * W * _rnd(4 * Co, lane) * 4                           # f32 matmul result
    out_buf = H * _rnd(W * 4 * Co, lane) * out_bytes               # dense output slab
    return 2 * in_buf + halo + im2col + acc + 2 * out_buf          # x2: double-buffered blocks


def _tensorcores_per_chip():
    """Best-effort TC-per-chip guess. Defaults to 2 (always correct, negligible overhead)."""
    try:
        kind = jax.devices()[0].device_kind.lower()
    except Exception:
        return 2
    if "v5 lite" in kind or "v5e" in kind or "v6" in kind:
        return 1          # single-TC chips: fewer, bigger grid steps win
    return 2              # v4/v5p megacore, v7x: keep >= 2 steps so both cores get work


def _pick_block(B, min_steps, per_slice_bytes, budget_bytes):
    """Largest divisor of B giving >= min_steps grid steps and fitting the VMEM budget."""
    best = None
    for cand in range(1, B + 1):
        if B % cand:
            continue
        if B // cand < min_steps:
            continue
        if cand * per_slice_bytes > budget_bytes:
            continue
        best = cand
    return best if best is not None else 1


def deconv3d_block(x, w, b, *, mxu_dtype=jnp.bfloat16):
    """x: (N, Cin, D, H, W); w: (Cin, Cout, 1, 4, 4) ConvTranspose3d weight; b: (Cout,).
    Returns (N, Cout, D, 2H, 2W) = ReLU(ConvTranspose3d(x) + b)."""
    N, Ci, D, H, W_ = x.shape
    Co = w.shape[1]
    K = w.shape[3]
    assert w.shape == (Ci, Co, 1, K, K) and K == 4

    out_dtype = x.dtype
    B = N * D

    # ---- generation-aware block sizing + explicit VMEM budget (v7x has 64 MiB physical).
    out_bytes = jnp.dtype(out_dtype).itemsize
    per_slice = _per_slice_vmem_bytes(H, W_, Ci, Co, out_bytes)
    min_steps = _tensorcores_per_chip()
    Bblk = _pick_block(B, min_steps, per_slice, budget_bytes=40 << 20)
    vmem_limit = int(min(max(2 * Bblk * per_slice + (4 << 20), 8 << 20), 48 << 20))

    # ---- channel-last with depth folded into batch (kernel depth = 1 => pointwise in D);
    #      cast to bf16 once here so the kernel never re-casts activations.
    xk = jnp.transpose(x, (0, 2, 3, 4, 1)).reshape(B, H, W_, Ci).astype(mxu_dtype)

    # ---- stack the 16 transposed-conv taps into one (9*Ci, 4*Co) matrix with a single
    #      static gather. Rows: input shift (s, t) in {-1,0,1}^2 x Ci; columns: output
    #      parity (r, c) x Co. Tap mapping: oh = 2*ih - 1 + kh  =>  kh = r + 1 - 2*s.
    si = np.arange(3)                                     # s + 1
    rr = np.arange(2)                                     # parity r (same tables apply to w)
    kh = rr[None, :] + 3 - 2 * si[:, None]                # (3, 2): kh(s, r)
    vh = (kh >= 0) & (kh < K)
    khc = np.clip(kh, 0, K - 1)
    w2 = w[:, :, 0]                                       # (Ci, Co, K, K)
    g = w2[:, :, khc, :][:, :, :, :, khc]                 # (Ci, Co, s, r, t, c)
    mask = vh[:, :, None, None] & vh[None, None, :, :]    # (s, r, t, c) tap validity
    g = g * jnp.asarray(mask[None, None], dtype=g.dtype)
    wk = jnp.transpose(g, (2, 4, 0, 3, 5, 1)).reshape(9 * Ci, 4 * Co).astype(mxu_dtype)

    # bias pre-tiled over (w, r, c) so the in-kernel add runs on the dense slab
    bk = jnp.tile(b.astype(jnp.float32), 4 * W_).reshape(1, W_ * 4 * Co)

    out = pl.pallas_call(
        _deconv_kernel,
        out_shape=jax.ShapeDtypeStruct((B, H, W_ * 4 * Co), out_dtype),
        grid=(B // Bblk,),
        in_specs=[
            pl.BlockSpec((Bblk, H, W_, Ci), lambda i: (i, 0, 0, 0)),
            pl.BlockSpec((9 * Ci, 4 * Co), lambda i: (0, 0)),   # constant map -> VMEM resident
            pl.BlockSpec((1, W_ * 4 * Co), lambda i: (0, 0)),
        ],
        out_specs=pl.BlockSpec((Bblk, H, W_ * 4 * Co), lambda i: (i, 0, 0)),
        scratch_shapes=[pltpu.VMEM((Bblk, H + 2, W_ + 2, Ci), mxu_dtype)],
        compiler_params=pltpu.CompilerParams(
            dimension_semantics=("parallel",),
            vmem_limit_bytes=vmem_limit,
        ),
    )(xk, wk, bk)

    # (B, H, W*4*Co) -> (N, Co, D, 2H, 2W). The first reshape is contiguous (free); only the
    # inherent channels-last -> NCDHW transpose remains (skip it if the consumer takes NDHWC).
    y = out.reshape(N, D, H, W_, 2, 2, Co)                 # (n, d, i, j, r, c, co)
    y = jnp.transpose(y, (0, 6, 1, 2, 4, 3, 5))            # (n, co, d, i, r, j, c)
    return y.reshape(N, Co, D, 2 * H, 2 * W_)


def _reference(x, w, b, mxu_dtype=jnp.bfloat16):
    """Pure-JAX reference: transposed conv == lhs-dilated conv with flipped kernel.
    Inputs/weights are cast to the same MXU dtype as the kernel (f32 accumulation)."""
    N, Ci, D, H, W_ = x.shape
    Co, K = w.shape[1], w.shape[3]
    xc = x.astype(mxu_dtype).astype(jnp.float32)
    wc = w.astype(mxu_dtype).astype(jnp.float32)
    x2 = jnp.transpose(xc, (0, 2, 1, 3, 4)).reshape(N * D, Ci, H, W_)
    w_conv = jnp.transpose(jnp.flip(wc[:, :, 0], axis=(2, 3)), (1, 0, 2, 3))   # (Co, Ci, K, K)
    y = jax.lax.conv_general_dilated(
        x2, w_conv, window_strides=(1, 1),
        padding=[(K - 2, K - 2)] * 2, lhs_dilation=(2, 2),
        dimension_numbers=("NCHW", "OIHW", "NCHW"),
        precision=jax.lax.Precision.HIGHEST)
    y = jnp.maximum(y + b[None, :, None, None].astype(jnp.float32), 0.0)
    return jnp.transpose(y.reshape(N, D, Co, 2 * H, 2 * W_), (0, 2, 1, 3, 4))


if __name__ == "__main__":
    # Small shapes consistent with the module: N=2, C_in=4, C_out=8, D=3, H=W=8.
    N, Ci, Co, D, H, W_ = 2, 4, 8, 3, 8, 8
    K = 4

    key = jax.random.PRNGKey(0)
    kx, kw, kb = jax.random.split(key, 3)
    x = jax.random.normal(kx, (N, Ci, D, H, W_), dtype=jnp.float32)
    # ConvTranspose3d weight shape: (Cin, Cout, 1, K, K)
    w = 0.1 * jax.random.normal(kw, (Ci, Co, 1, K, K), dtype=jnp.float32)
    b = 0.05 * jax.random.normal(kb, (Co,), dtype=jnp.float32)

    y = deconv3d_block(x, w, b)
    jax.block_until_ready(y)

    y_ref = _reference(x, w, b)
    assert y.shape == (N, Co, D, 2 * H, 2 * W_), y.shape
    np.testing.assert_allclose(np.asarray(y), np.asarray(y_ref), atol=2e-3, rtol=2e-3)

    print("KERNEL_OK")
</pallas_src>

<mosaic_0001>
module attributes {stable_mosaic.version = 11 : i64} {
  func.func @_deconv_kernel(%arg0: i32, %arg1: memref<3x8x8x4xbf16, #tpu.memory_space<vmem>>, %arg2: memref<36x32xbf16, #tpu.memory_space<vmem>>, %arg3: memref<1x256xf32, #tpu.memory_space<vmem>>, %arg4: memref<3x8x256xf32, #tpu.memory_space<vmem>>, %arg5: memref<3x10x10x4xbf16, #tpu.memory_space<vmem>>) attributes {dimension_semantics = [#tpu.dimension_semantics<parallel>], iteration_bounds = array<i64: 2>, scalar_prefetch = 0 : i64, scratch_operands = 1 : i64, tpu.core_type = #tpu.core_type<tc>, window_params = [{transform_indices = @transform_0, window_bounds = array<i64: 3, 8, 8, 4>}, {pipeline_mode = #tpu.pipeline_mode<synchronous>, transform_indices = @transform_1, window_bounds = array<i64: 36, 32>}, {pipeline_mode = #tpu.pipeline_mode<synchronous>, transform_indices = @transform_2, window_bounds = array<i64: 1, 256>}, {transform_indices = @transform_3, window_bounds = array<i64: 3, 8, 256>}]} {
    %cst = arith.constant 0.000000e+00 : bf16
    %0 = vector.broadcast %cst : bf16 to vector<3x1x10x4xbf16>
    %cst_0 = arith.constant 0.000000e+00 : bf16
    %1 = vector.broadcast %cst_0 : bf16 to vector<3x10x1x4xbf16>
    %c0 = arith.constant 0 : index
    %c0_1 = arith.constant 0 : index
    %c0_2 = arith.constant 0 : index
    %c0_3 = arith.constant 0 : index
    %2 = vector.load %arg5[%c0, %c0_1, %c0_2, %c0_3] : memref<3x10x10x4xbf16, #tpu.memory_space<vmem>>, vector<3x1x10x4xbf16>
    tpu.vector_store %arg5[%c0, %c0_1, %c0_2, %c0_3], %0 {strides = array<i32>} : memref<3x10x10x4xbf16, #tpu.memory_space<vmem>>, vector<3x1x10x4xbf16>,
    %c0_4 = arith.constant 0 : index
    %c9 = arith.constant 9 : index
    %c0_5 = arith.constant 0 : index
    %c0_6 = arith.constant 0 : index
    %3 = vector.load %arg5[%c0_4, %c9, %c0_5, %c0_6] : memref<3x10x10x4xbf16, #tpu.memory_space<vmem>>, vector<3x1x10x4xbf16>
    tpu.vector_store %arg5[%c0_4, %c9, %c0_5, %c0_6], %0 {strides = array<i32>} : memref<3x10x10x4xbf16, #tpu.memory_space<vmem>>, vector<3x1x10x4xbf16>,
    %c0_7 = arith.constant 0 : index
    %c0_8 = arith.constant 0 : index
    %c0_9 = arith.constant 0 : index
    %c0_10 = arith.constant 0 : index
    %4 = vector.load %arg5[%c0_7, %c0_8, %c0_9, %c0_10] : memref<3x10x10x4xbf16, #tpu.memory_space<vmem>>, vector<3x10x1x4xbf16>
    tpu.vector_store %arg5[%c0_7, %c0_8, %c0_9, %c0_10], %1 {strides = array<i32>} : memref<3x10x10x4xbf16, #tpu.memory_space<vmem>>, vector<3x10x1x4xbf16>,
    %c0_11 = arith.constant 0 : index
    %c0_12 = arith.constant 0 : index
    %c9_13 = arith.constant 9 : index
    %c0_14 = arith.constant 0 : index
    %5 = vector.load %arg5[%c0_11, %c0_12, %c9_13, %c0_14] : memref<3x10x10x4xbf16, #tpu.memory_space<vmem>>, vector<3x10x1x4xbf16>
    tpu.vector_store %arg5[%c0_11, %c0_12, %c9_13, %c0_14], %1 {strides = array<i32>} : memref<3x10x10x4xbf16, #tpu.memory_space<vmem>>, vector<3x10x1x4xbf16>,
    %c0_15 = arith.constant 0 : index
    %c0_16 = arith.constant 0 : index
    %c0_17 = arith.constant 0 : index
    %c0_18 = arith.constant 0 : index
    %6 = vector.load %arg1[%c0_15, %c0_16, %c0_17, %c0_18] : memref<3x8x8x4xbf16, #tpu.memory_space<vmem>>, vector<3x8x8x4xbf16>
    %c0_19 = arith.constant 0 : index
    %c1 = arith.constant 1 : index
    %c1_20 = arith.constant 1 : index
    %c0_21 = arith.constant 0 : index
    %7 = vector.load %arg5[%c0_19, %c1, %c1_20, %c0_21] : memref<3x10x10x4xbf16, #tpu.memory_space<vmem>>, vector<3x8x8x4xbf16>
    tpu.vector_store %arg5[%c0_19, %c1, %c1_20, %c0_21], %6 {strides = array<i32>} : memref<3x10x10x4xbf16, #tpu.memory_space<vmem>>, vector<3x8x8x4xbf16>,
    %c0_22 = arith.constant 0 : index
    %c0_23 = arith.constant 0 : index
    %c0_24 = arith.constant 0 : index
    %c0_25 = arith.constant 0 : index
    %8 = vector.load %arg5[%c0_22, %c0_23, %c0_24, %c0_25] : memref<3x10x10x4xbf16, #tpu.memory_space<vmem>>, vector<3x10x10x4xbf16>
    %9 = vector.extract_strided_slice %8 {offsets = [0, 0, 0, 0], sizes = [3, 8, 8, 4], strides = [1, 1, 1, 1]} : vector<3x10x10x4xbf16> to vector<3x8x8x4xbf16>
    %10 = vector.extract_strided_slice %8 {offsets = [0, 0, 1, 0], sizes = [3, 8, 8, 4], strides = [1, 1, 1, 1]} : vector<3x10x10x4xbf16> to vector<3x8x8x4xbf16>
    %11 = vector.extract_strided_slice %8 {offsets = [0, 0, 2, 0], sizes = [3, 8, 8, 4], strides = [1, 1, 1, 1]} : vector<3x10x10x4xbf16> to vector<3x8x8x4xbf16>
    %12 = vector.extract_strided_slice %8 {offsets = [0, 1, 0, 0], sizes = [3, 8, 8, 4], strides = [1, 1, 1, 1]} : vector<3x10x10x4xbf16> to vector<3x8x8x4xbf16>
    %13 = vector.extract_strided_slice %8 {offsets = [0, 1, 1, 0], sizes = [3, 8, 8, 4], strides = [1, 1, 1, 1]} : vector<3x10x10x4xbf16> to vector<3x8x8x4xbf16>
    %14 = vector.extract_strided_slice %8 {offsets = [0, 1, 2, 0], sizes = [3, 8, 8, 4], strides = [1, 1, 1, 1]} : vector<3x10x10x4xbf16> to vector<3x8x8x4xbf16>
    %15 = vector.extract_strided_slice %8 {offsets = [0, 2, 0, 0], sizes = [3, 8, 8, 4], strides = [1, 1, 1, 1]} : vector<3x10x10x4xbf16> to vector<3x8x8x4xbf16>
    %16 = vector.extract_strided_slice %8 {offsets = [0, 2, 1, 0], sizes = [3, 8, 8, 4], strides = [1, 1, 1, 1]} : vector<3x10x10x4xbf16> to vector<3x8x8x4xbf16>
    %17 = vector.extract_strided_slice %8 {offsets = [0, 2, 2, 0], sizes = [3, 8, 8, 4], strides = [1, 1, 1, 1]} : vector<3x10x10x4xbf16> to vector<3x8x8x4xbf16>
    %18 = tpu.concatenate %9, %10, %11, %12, %13, %14, %15, %16, %17 in 3 : vector<3x8x8x4xbf16>, vector<3x8x8x4xbf16>, vector<3x8x8x4xbf16>, vector<3x8x8x4xbf16>, vector<3x8x8x4xbf16>, vector<3x8x8x4xbf16>, vector<3x8x8x4xbf16>, vector<3x8x8x4xbf16>, vector<3x8x8x4xbf16> -> vector<3x8x8x36xbf16>
    %19 = vector.shape_cast %18 : vector<3x8x8x36xbf16> to vector<192x36xbf16>
    %c0_26 = arith.constant 0 : index
    %c0_27 = arith.constant 0 : index
    %20 = vector.load %arg2[%c0_26, %c0_27] : memref<36x32xbf16, #tpu.memory_space<vmem>>, vector<36x32xbf16>
    %cst_28 = arith.constant dense<0.000000e+00> : vector<192x32xf32>
    %21 = tpu.matmul %19, %20, %cst_28 {dimension_numbers = #tpu.dot_dimension_numbers<[1], [0], [0], [1], [0, 0, 1, 1], [], []>} : vector<192x36xbf16>, vector<36x32xbf16>, vector<192x32xf32> -> vector<192x32xf32>
    %22 = vector.shape_cast %21 : vector<192x32xf32> to vector<3x8x8x32xf32>
    %23 = vector.extract_strided_slice %22 {offsets = [0, 0, 0, 0], sizes = [3, 8, 1, 32], strides = [1, 1, 1, 1]} : vector<3x8x8x32xf32> to vector<3x8x1x32xf32>
    %24 = vector.shape_cast %23 : vector<3x8x1x32xf32> to vector<3x8x32xf32>
    %25 = vector.extract_strided_slice %22 {offsets = [0, 0, 1, 0], sizes = [3, 8, 1, 32], strides = [1, 1, 1, 1]} : vector<3x8x8x32xf32> to vector<3x8x1x32xf32>
    %26 = vector.shape_cast %25 : vector<3x8x1x32xf32> to vector<3x8x32xf32>
    %27 = vector.extract_strided_slice %22 {offsets = [0, 0, 2, 0], sizes = [3, 8, 1, 32], strides = [1, 1, 1, 1]} : vector<3x8x8x32xf32> to vector<3x8x1x32xf32>
    %28 = vector.shape_cast %27 : vector<3x8x1x32xf32> to vector<3x8x32xf32>
    %29 = vector.extract_strided_slice %22 {offsets = [0, 0, 3, 0], sizes = [3, 8, 1, 32], strides = [1, 1, 1, 1]} : vector<3x8x8x32xf32> to vector<3x8x1x32xf32>
    %30 = vector.shape_cast %29 : vector<3x8x1x32xf32> to vector<3x8x32xf32>
    %31 = vector.extract_strided_slice %22 {offsets = [0, 0, 4, 0], sizes = [3, 8, 1, 32], strides = [1, 1, 1, 1]} : vector<3x8x8x32xf32> to vector<3x8x1x32xf32>
    %32 = vector.shape_cast %31 : vector<3x8x1x32xf32> to vector<3x8x32xf32>
    %33 = vector.extract_strided_slice %22 {offsets = [0, 0, 5, 0], sizes = [3, 8, 1, 32], strides = [1, 1, 1, 1]} : vector<3x8x8x32xf32> to vector<3x8x1x32xf32>
    %34 = vector.shape_cast %33 : vector<3x8x1x32xf32> to vector<3x8x32xf32>
    %35 = vector.extract_strided_slice %22 {offsets = [0, 0, 6, 0], sizes = [3, 8, 1, 32], strides = [1, 1, 1, 1]} : vector<3x8x8x32xf32> to vector<3x8x1x32xf32>
    %36 = vector.shape_cast %35 : vector<3x8x1x32xf32> to vector<3x8x32xf32>
    %37 = vector.extract_strided_slice %22 {offsets = [0, 0, 7, 0], sizes = [3, 8, 1, 32], strides = [1, 1, 1, 1]} : vector<3x8x8x32xf32> to vector<3x8x1x32xf32>
    %38 = vector.shape_cast %37 : vector<3x8x1x32xf32> to vector<3x8x32xf32>
    %39 = tpu.concatenate %24, %26, %28, %30, %32, %34, %36, %38 in 2 : vector<3x8x32xf32>, vector<3x8x32xf32>, vector<3x8x32xf32>, vector<3x8x32xf32>, vector<3x8x32xf32>, vector<3x8x32xf32>, vector<3x8x32xf32>, vector<3x8x32xf32> -> vector<3x8x256xf32>
    %c0_29 = arith.constant 0 : index
    %c0_30 = arith.constant 0 : index
    %40 = vector.load %arg3[%c0_29, %c0_30] : memref<1x256xf32, #tpu.memory_space<vmem>>, vector<1x256xf32>
    %41 = vector.shape_cast %40 : vector<1x256xf32> to vector<1x1x256xf32>
    %42 = vector.broadcast %41 : vector<1x1x256xf32> to vector<3x8x256xf32>
    %43 = arith.addf %39, %42 : vector<3x8x256xf32>
    %cst_31 = arith.constant 0.000000e+00 : f32
    %44 = vector.broadcast %cst_31 : f32 to vector<3x8x256xf32>
    %45 = arith.maximumf %43, %44 : vector<3x8x256xf32>
    %c0_32 = arith.constant 0 : index
    %c0_33 = arith.constant 0 : index
    %c0_34 = arith.constant 0 : index
    %46 = vector.load %arg4[%c0_32, %c0_33, %c0_34] : memref<3x8x256xf32, #tpu.memory_space<vmem>>, vector<3x8x256xf32>
    tpu.vector_store %arg4[%c0_32, %c0_33, %c0_34], %45 {strides = array<i32>} : memref<3x8x256xf32, #tpu.memory_space<vmem>>, vector<3x8x256xf32>,
    return
  }
  func.func @transform_0(%arg0: i32) -> (i32, i32, i32, i32) {
    %c0_i32 = arith.constant 0 : i32
    %c0_i32_0 = arith.constant 0 : i32
    %c0_i32_1 = arith.constant 0 : i32
    %c0_i32_2 = arith.constant 0 : i32
    return %arg0, %c0_i32, %c0_i32_0, %c0_i32_1 : i32, i32, i32, i32
  }
  func.func @transform_1(%arg0: i32) -> (i32, i32) {
    %c0_i32 = arith.constant 0 : i32
    %c0_i32_0 = arith.constant 0 : i32
    %c0_i32_1 = arith.constant 0 : i32
    return %c0_i32, %c0_i32_0 : i32, i32
  }
  func.func @transform_2(%arg0: i32) -> (i32, i32) {
    %c0_i32 = arith.constant 0 : i32
    %c0_i32_0 = arith.constant 0 : i32
    %c0_i32_1 = arith.constant 0 : i32
    return %c0_i32, %c0_i32_0 : i32, i32
  }
  func.func @transform_3(%arg0: i32) -> (i32, i32, i32) {
    %c0_i32 = arith.constant 0 : i32
    %c0_i32_0 = arith.constant 0 : i32
    %c0_i32_1 = arith.constant 0 : i32
    return %arg0, %c0_i32, %c0_i32_0 : i32, i32, i32
  }
}

</mosaic_0001>

<llo_original>
// kernel: tpu_custom_call.1
$region0: #{tpu_custom_call.1}
  #allocation0 [shape = 'u32[]', space=smem, size = 0x4, offset = 0x4, fixed_abs, tag = 'smem constant byte address 0x4 - core index']
  #allocation1 [shape = 'u32[144,128]{1,0:T(1,128)}', space=vmem, size = 0x12000, scoped, tag = 'internal scratch']
  #allocation2 [shape = 'bf16[3,10,10,4]{3,2,1,0:T(8,128)(2,1)}', space=vmem, size = 0x1e000, scoped, tag = 'scratch operand']
  %s0 = inlined_call_operand.vmem [shape: bf16[6,8,8,4], index: 0, kind: input, shape index: {}]
  %s1 = inlined_call_operand.vmem [shape: bf16[36,32], index: 1, kind: input, shape index: {}]
  %s2 = inlined_call_operand.vmem [shape: f32[1,256], index: 2, kind: input, shape index: {}]
  %s3 = inlined_call_operand.hbm [shape: f32[6,8,256], index: 3, kind: output, shape index: {}]
  %s4 = sld [smem:[#allocation0]]
  $region45: #{tpu_custom_call.1} parent=0
    _
  %s6 = ssub.s32 1, %s4
  %s7 = scalar_select 0, %s6, %s4
  $region1: #{tpu_custom_call.1} parent=0
    #allocation3 [shape = 'u8[49152]{0}', space=vmem, size = 0xc000, scoped, tag = 'output window, operand 0']
    #allocation4 [shape = 's32[2]{0}', space=sflag, size = 0x8, scoped, tag = 'scoped memory for tpu_custom_call.1']
    %8 = vsyncpa [#allocation4], 0
    %s9 = scalar_lea.sflag [#allocation4], 1
    %10 = vsyncpa %s9, 0
    loop: start=0, step=1, limit=4
    $region2: #{tpu_custom_call.1} parent=1 // loop_pre_header
      _
    $region3: #{tpu_custom_call.1} parent=1 // loop_header
      %s12 = sphi 0, %s16
      %p13 = scmp.ge.s32.totalorder %s12, 4
      %s22 = sphi 0, %s24
      %s25 = sphi 0, %s22
      %s26 = sphi 0, %s25
      %s42 = sphi 0, %s26
      %s46 = sphi 0, %s46
      %s48 = sphi 0, %s46
      %s49 = sphi 0, %s48
      %s63 = sphi 0, %s49
      %s67 = sphi 0, %s67
      %s69 = sphi 0, %s67
      %s70 = sphi 0, %s69
      %s84 = sphi 0, %s70
      %s90 = sphi 0, %s92
      %s93 = sphi 0, %s90
      %s94 = sphi 0, %s93
      %s110 = sphi 0, %s94
    $region4: #{tpu_custom_call.1} parent=1 // loop_header_branch
      %15 = sbr.rel (%p13) target = $region8
    $region5: #{tpu_custom_call.1} parent=1 // loop_body
      %s17 = ssub.s32 %s12, 1
      %s18 = ssub.s32 %s12, 2
      %s19 = sadd.s32 %s12, 1
      %s20 = ssub.s32 %s12, %s19
      %p21 = scmp.eq.s32.totalorder %s20, 0
      %s23 = sadd.s32 %s22, 1
      %s24 = scalar_select %p21, %s22, %s23
      %p27 = pneg %p21
      %p28 = scmp.eq.s32.totalorder %s12, 1
      %p29 = por %p27, %p28
      %p30 = scmp.ne.s32.totalorder %s22, %s25
      %p31 = scmp.eq.s32.totalorder %s12, 0
      %p32 = por %p30, %p31
      %p33 = scmp.ne.s32.totalorder %s22, %s25
      %p34 = scmp.eq.s32.totalorder %s17, 1
      %p35 = por %p33, %p34
      %p36 = scmp.ne.s32.totalorder %s25, %s26
      %p37 = scmp.eq.s32.totalorder %s17, 0
      %p38 = por %p36, %p37
      %p39 = scmp.ne.s32.totalorder %s25, %s26
      %p40 = scmp.eq.s32.totalorder %s18, 1
      %p41 = por %p39, %p40
      %p43 = scmp.ne.s32.totalorder %s26, %s42
      %p44 = scmp.eq.s32.totalorder %s18, 0
      %p45 = por %p43, %p44
      %s47 = sadd.s32 %s46, 1
      %p50 = scmp.eq.s32.totalorder %s12, 1
      %p51 = scmp.ne.s32.totalorder %s46, %s48
      %p52 = scmp.eq.s32.totalorder %s12, 0
      %p53 = por %p51, %p52
      %p54 = scmp.ne.s32.totalorder %s46, %s48
      %p55 = scmp.eq.s32.totalorder %s17, 1
      %p56 = por %p54, %p55
      %p57 = scmp.ne.s32.totalorder %s48, %s49
      %p58 = scmp.eq.s32.totalorder %s17, 0
      %p59 = por %p57, %p58
      %p60 = scmp.ne.s32.totalorder %s48, %s49
      %p61 = scmp.eq.s32.totalorder %s18, 1
      %p62 = por %p60, %p61
      %p64 = scmp.ne.s32.totalorder %s49, %s63
      %p65 = scmp.eq.s32.totalorder %s18, 0
      %p66 = por %p64, %p65
      %s68 = sadd.s32 %s67, 1
      %p71 = scmp.eq.s32.totalorder %s12, 1
      %p72 = scmp.ne.s32.totalorder %s67, %s69
      %p73 = scmp.eq.s32.totalorder %s12, 0
      %p74 = por %p72, %p73
      %p75 = scmp.ne.s32.totalorder %s67, %s69
      %p76 = scmp.eq.s32.totalorder %s17, 1
      %p77 = por %p75, %p76
      %p78 = scmp.ne.s32.totalorder %s69, %s70
      %p79 = scmp.eq.s32.totalorder %s17, 0
      %p80 = por %p78, %p79
      %p81 = scmp.ne.s32.totalorder %s69, %s70
      %p82 = scmp.eq.s32.totalorder %s18, 1
      %p83 = por %p81, %p82
      %p85 = scmp.ne.s32.totalorder %s70, %s84
      %p86 = scmp.eq.s32.totalorder %s18, 0
      %p87 = por %p85, %p86
      %s88 = ssub.s32 %s12, %s19
      %p89 = scmp.eq.s32.totalorder %s88, 0
      %s91 = sadd.s32 %s90, 1
      %s92 = scalar_select %p89, %s90, %s91
      %p95 = pneg %p89
      %p96 = scmp.eq.s32.totalorder %s12, 1
      %p97 = por %p95, %p96
      %p98 = scmp.ne.s32.totalorder %s90, %s93
      %p99 = scmp.eq.s32.totalorder %s12, 0
      %p100 = por %p98, %p99
      %p101 = scmp.ne.s32.totalorder %s90, %s93
      %p102 = scmp.eq.s32.totalorder %s17, 1
      %p103 = por %p101, %p102
      %p104 = scmp.ne.s32.totalorder %s93, %s94
      %p105 = scmp.eq.s32.totalorder %s17, 0
      %p106 = por %p104, %p105
      %p107 = scmp.ne.s32.totalorder %s93, %s94
      %p108 = scmp.eq.s32.totalorder %s18, 1
      %p109 = por %p107, %p108
      %p111 = scmp.ne.s32.totalorder %s94, %s110
      %p112 = scmp.eq.s32.totalorder %s18, 0
      %p113 = por %p111, %p112
      %p114 = scmp.le.s32.totalorder 1, %s12
      %p115 = scmp.lt.s32.totalorder %s12, 3
      %p116 = pnand %p114, %p115
      %p117 = pneg %p116
      // Predicated region
      $region9: #{tpu_custom_call.1} parent=5 // pred_check
        _
      $region10: #{tpu_custom_call.1} parent=5 // pred_check_branch
        %119 = sbr.rel (%p116) target = $region12
      $region11: #{tpu_custom_call.1} parent=5 // pred_region
        %s120 = ssub.s32 %s12, 1
        // Predicated region
        $region13: #{tpu_custom_call.1} parent=11 // pred_check
          %p121 = pneg %p59
        $region14: #{tpu_custom_call.1} parent=11 // pred_check_branch
          %123 = sbr.rel (%p121) target = $region16
        $region15: #{tpu_custom_call.1} parent=11 // pred_region
          _
        $region16: #{tpu_custom_call.1} parent=11 // pred_fallthru
          _
        // Predicated region
        $region17: #{tpu_custom_call.1} parent=11 // pred_check
          %p124 = pneg %p80
        $region18: #{tpu_custom_call.1} parent=11 // pred_check_branch
          %126 = sbr.rel (%p124) target = $region20
        $region19: #{tpu_custom_call.1} parent=11 // pred_region
          _
        $region20: #{tpu_custom_call.1} parent=11 // pred_fallthru
          _
      $region12: #{tpu_custom_call.1} parent=5 // pred_fallthru
        _
      %p127 = scmp.lt.s32.totalorder %s12, 2
      // Predicated region
      $region21: #{tpu_custom_call.1} parent=5 // pred_check
        %p128 = pneg %p127
      $region22: #{tpu_custom_call.1} parent=5 // pred_check_branch
        %130 = sbr.rel (%p128) target = $region24
      $region23: #{tpu_custom_call.1} parent=5 // pred_region
        // Predicated region
        $region25: #{tpu_custom_call.1} parent=23 // pred_check
          %p131 = pneg %p32
        $region26: #{tpu_custom_call.1} parent=23 // pred_check_branch
          %133 = sbr.rel (%p131) target = $region28
        $region27: #{tpu_custom_call.1} parent=23 // pred_region
          %s134 = smul.u32 3, %s12
          %p135 = scmp.lt.s32.totalorder %s134, 5
          %s136 = scalar_select %p135, %s134, 5
          %s137 = smul.addr %s136, 8
          %s138 = smul.addr %s137, 4
          %s139 = scalar_lea.vmem %s0, %s138
          %s140 = smul.u32 3, %s12
        $region28: #{tpu_custom_call.1} parent=23 // pred_fallthru
          _
      $region24: #{tpu_custom_call.1} parent=5 // pred_fallthru
        _
      %p141 = scmp.le.s32.totalorder 1, %s12
      %p142 = scmp.lt.s32.totalorder %s12, 3
      %p143 = pnand %p141, %p142
      %p144 = pneg %p143
      // Predicated region
      $region29: #{tpu_custom_call.1} parent=5 // pred_check
        _
      $region30: #{tpu_custom_call.1} parent=5 // pred_check_branch
        %146 = sbr.rel (%p143) target = $region32
      $region31: #{tpu_custom_call.1} parent=5 // pred_region
        %s147 = ssub.s32 %s12, 1
        %s148 = smul.u32 3, %s17
        %p149 = scmp.lt.s32.totalorder %s148, 5
        %s150 = scalar_select %p149, %s148, 5
        %s151 = smul.addr %s150, 8
        %s152 = smul.addr %s151, 4
        %s153 = scalar_lea.vmem %s0, %s152
        %p154 = pneg %p38
        %p155 = pneg %p35
        %p156 = pneg %p59
        %p157 = pneg %p56
        %p158 = pneg %p80
        %p159 = pneg %p77
        %p160 = pneg %p106
        %p161 = pneg %p103
        %s162 = sand.u32 %s93, 1
        %s163 = scalar_lea.sflag [#allocation4], %s162
        %s164 = sand.u32 %s93, 1
        %s165 = smul.addr %s164, 48
        %s166 = scalar_lea.vmem [#allocation3], %s165
        %s167 = smul.u32 3, %s17
        %p168 = scmp.lt.s32.totalorder %s167, 5
        %s169 = scalar_select %p168, %s167, 5
        %s170 = smul.addr %s169, 8
        %s171 = smul.addr %s170, 4
        %s172 = scalar_lea.vmem %s0, %s171
        %s173 = smul.u32 3, %s17
        %s174 = smul.u32 3, %s17
        %vm176 = vcmask 27648
        %177 = vst.msk [vmem:[#allocation2] sm:$0xf] %vm176, 0
        %vm178 = vcmask 24576
        %179 = vst.msk [vmem:[#allocation2 + $0x4] sm:$0x1] %vm178, 0
        %180 = vst.msk [vmem:[#allocation2 + $0x50] sm:$0xf] %vm176, 0
        %181 = vst.msk [vmem:[#allocation2 + $0x54] sm:$0x1] %vm178, 0
        %182 = vst.msk [vmem:[#allocation2 + $0xa0] sm:$0xf] %vm176, 0
        %183 = vst.msk [vmem:[#allocation2 + $0xa4] sm:$0x1] %vm178, 0
        %s184 = scalar_lea.vmem [#allocation2], 72
        %185 = vst.msk [vmem:[%s184] sm:$0xf] %vm176, 0
        %186 = vst.msk [vmem:[%s184 + $0x4] sm:$0x1] %vm178, 0
        %187 = vst.msk [vmem:[%s184 + $0x50] sm:$0xf] %vm176, 0
        %188 = vst.msk [vmem:[%s184 + $0x54] sm:$0x1] %vm178, 0
        %189 = vst.msk [vmem:[%s184 + $0xa0] sm:$0xf] %vm176, 0
        %190 = vst.msk [vmem:[%s184 + $0xa4] sm:$0x1] %vm178, 0
        %vm191 = vcmask 24576
        %vm192 = vsmask.f32 256
        %vm193 = vmand %vm191, %vm192
        %v194 = vld [vmem:[#allocation2] sm:$0x1]
        %v195 = vsel %vm193, 0, %v194
        %196 = vst [vmem:[#allocation2] sm:$0x1] %v195
        %v197 = vld [vmem:[#allocation2 + $0x8] sm:$0x1]
        %v198 = vsel %vm193, 0, %v197
        %199 = vst [vmem:[#allocation2 + $0x8] sm:$0x1] %v198
        %v200 = vld [vmem:[#allocation2 + $0x10] sm:$0x1]
        %v201 = vsel %vm193, 0, %v200
        %202 = vst [vmem:[#allocation2 + $0x10] sm:$0x1] %v201
        %v203 = vld [vmem:[#allocation2 + $0x18] sm:$0x1]
        %v204 = vsel %vm193, 0, %v203
        %205 = vst [vmem:[#allocation2 + $0x18] sm:$0x1] %v204
        %v206 = vld [vmem:[#allocation2 + $0x20] sm:$0x1]
        %v207 = vsel %vm193, 0, %v206
        %208 = vst [vmem:[#allocation2 + $0x20] sm:$0x1] %v207
        %v209 = vld [vmem:[#allocation2 + $0x28] sm:$0x1]
        %v210 = vsel %vm193, 0, %v209
        %211 = vst [vmem:[#allocation2 + $0x28] sm:$0x1] %v210
        %v212 = vld [vmem:[#allocation2 + $0x30] sm:$0x1]
        %v213 = vsel %vm193, 0, %v212
        %214 = vst [vmem:[#allocation2 + $0x30] sm:$0x1] %v213
        %v215 = vld [vmem:[#allocation2 + $0x38] sm:$0x1]
        %v216 = vsel %vm193, 0, %v215
        %217 = vst [vmem:[#allocation2 + $0x38] sm:$0x1] %v216
        %v218 = vld [vmem:[#allocation2 + $0x40] sm:$0x1]
        %v219 = vsel %vm193, 0, %v218
        %220 = vst [vmem:[#allocation2 + $0x40] sm:$0x1] %v219
        %v221 = vld [vmem:[#allocation2 + $0x48] sm:$0x1]
        %v222 = vsel %vm193, 0, %v221
        %223 = vst [vmem:[#allocation2 + $0x48] sm:$0x1] %v222
        %v224 = vld [vmem:[#allocation2 + $0x50] sm:$0x1]
        %v225 = vsel %vm193, 0, %v224
        %226 = vst [vmem:[#allocation2 + $0x50] sm:$0x1] %v225
        %v227 = vld [vmem:[#allocation2 + $0x58] sm:$0x1]
        %v228 = vsel %vm193, 0, %v227
        %229 = vst [vmem:[#allocation2 + $0x58] sm:$0x1] %v228
        %v230 = vld [vmem:[#allocation2 + $0x60] sm:$0x1]
        %v231 = vsel %vm193, 0, %v230
        %232 = vst [vmem:[#allocation2 + $0x60] sm:$0x1] %v231
        %v233 = vld [vmem:[#allocation2 + $0x68] sm:$0x1]
        %v234 = vsel %vm193, 0, %v233
        %235 = vst [vmem:[#allocation2 + $0x68] sm:$0x1] %v234
        %v236 = vld [vmem:[#allocation2 + $0x70] sm:$0x1]
        %v237 = vsel %vm193, 0, %v236
        %238 = vst [vmem:[#allocation2 + $0x70] sm:$0x1] %v237
        %v239 = vld [vmem:[#allocation2 + $0x78] sm:$0x1]
        %v240 = vsel %vm193, 0, %v239
        %241 = vst [vmem:[#allocation2 + $0x78] sm:$0x1] %v240
        %v242 = vld [vmem:[#allocation2 + $0x80] sm:$0x1]
        %v243 = vsel %vm193, 0, %v242
        %244 = vst [vmem:[#allocation2 + $0x80] sm:$0x1] %v243
        %v245 = vld [vmem:[#allocation2 + $0x88] sm:$0x1]
        %v246 = vsel %vm193, 0, %v245
        %247 = vst [vmem:[#allocation2 + $0x88] sm:$0x1] %v246
        %v248 = vld [vmem:[#allocation2 + $0x90] sm:$0x1]
        %v249 = vsel %vm193, 0, %v248
        %250 = vst [vmem:[#allocation2 + $0x90] sm:$0x1] %v249
        %v251 = vld [vmem:[#allocation2 + $0x98] sm:$0x1]
        %v252 = vsel %vm193, 0, %v251
        %253 = vst [vmem:[#allocation2 + $0x98] sm:$0x1] %v252
        %v254 = vld [vmem:[#allocation2 + $0xa0] sm:$0x1]
        %v255 = vsel %vm193, 0, %v254
        %256 = vst [vmem:[#allocation2 + $0xa0] sm:$0x1] %v255
        %v257 = vld [vmem:[#allocation2 + $0xa8] sm:$0x1]
        %v258 = vsel %vm193, 0, %v257
        %259 = vst [vmem:[#allocation2 + $0xa8] sm:$0x1] %v258
        %v260 = vld [vmem:[#allocation2 + $0xb0] sm:$0x1]
        %v261 = vsel %vm193, 0, %v260
        %262 = vst [vmem:[#allocation2 + $0xb0] sm:$0x1] %v261
        %v263 = vld [vmem:[#allocation2 + $0xb8] sm:$0x1]
        %v264 = vsel %vm193, 0, %v263
        %265 = vst [vmem:[#allocation2 + $0xb8] sm:$0x1] %v264
        %v266 = vld [vmem:[#allocation2 + $0xc0] sm:$0x1]
        %v267 = vsel %vm193, 0, %v266
        %268 = vst [vmem:[#allocation2 + $0xc0] sm:$0x1] %v267
        %v269 = vld [vmem:[#allocation2 + $0xc8] sm:$0x1]
        %v270 = vsel %vm193, 0, %v269
        %271 = vst [vmem:[#allocation2 + $0xc8] sm:$0x1] %v270
        %v272 = vld [vmem:[#allocation2 + $0xd0] sm:$0x1]
        %v273 = vsel %vm193, 0, %v272
        %274 = vst [vmem:[#allocation2 + $0xd0] sm:$0x1] %v273
        %v275 = vld [vmem:[#allocation2 + $0xd8] sm:$0x1]
        %v276 = vsel %vm193, 0, %v275
        %277 = vst [vmem:[#allocation2 + $0xd8] sm:$0x1] %v276
        %v278 = vld [vmem:[#allocation2 + $0xe0] sm:$0x1]
        %v279 = vsel %vm193, 0, %v278
        %280 = vst [vmem:[#allocation2 + $0xe0] sm:$0x1] %v279
        %v281 = vld [vmem:[#allocation2 + $0xe8] sm:$0x1]
        %v282 = vsel %vm193, 0, %v281
        %283 = vst [vmem:[#allocation2 + $0xe8] sm:$0x1] %v282
        %vm284 = vsmask.f32 7938
        %vm285 = vmand %vm191, %vm284
        %v286 = vld [vmem:[#allocation2 + $0x4] sm:$0x1]
        %v287 = vsel %vm285, 0, %v286
        %288 = vst [vmem:[#allocation2 + $0x4] sm:$0x1] %v287
        %v289 = vld [vmem:[#allocation2 + $0xc] sm:$0x1]
        %v290 = vsel %vm285, 0, %v289
        %291 = vst [vmem:[#allocation2 + $0xc] sm:$0x1] %v290
        %v292 = vld [vmem:[#allocation2 + $0x14] sm:$0x1]
        %v293 = vsel %vm285, 0, %v292
        %294 = vst [vmem:[#allocation2 + $0x14] sm:$0x1] %v293
        %v295 = vld [vmem:[#allocation2 + $0x1c] sm:$0x1]
        %v296 = vsel %vm285, 0, %v295
        %297 = vst [vmem:[#allocation2 + $0x1c] sm:$0x1] %v296
        %v298 = vld [vmem:[#allocation2 + $0x24] sm:$0x1]
        %v299 = vsel %vm285, 0, %v298
        %300 = vst [vmem:[#allocation2 + $0x24] sm:$0x1] %v299
        %v301 = vld [vmem:[#allocation2 + $0x2c] sm:$0x1]
        %v302 = vsel %vm285, 0, %v301
        %303 = vst [vmem:[#allocation2 + $0x2c] sm:$0x1] %v302
        %v304 = vld [vmem:[#allocation2 + $0x34] sm:$0x1]
        %v305 = vsel %vm285, 0, %v304
        %306 = vst [vmem:[#allocation2 + $0x34] sm:$0x1] %v305
        %v307 = vld [vmem:[#allocation2 + $0x3c] sm:$0x1]
        %v308 = vsel %vm285, 0, %v307
        %309 = vst [vmem:[#allocation2 + $0x3c] sm:$0x1] %v308
        %v310 = vld [vmem:[#allocation2 + $0x44] sm:$0x1]
        %v311 = vsel %vm285, 0, %v310
        %312 = vst [vmem:[#allocation2 + $0x44] sm:$0x1] %v311
        %v313 = vld [vmem:[#allocation2 + $0x4c] sm:$0x1]
        %v314 = vsel %vm285, 0, %v313
        %315 = vst [vmem:[#allocation2 + $0x4c] sm:$0x1] %v314
        %v316 = vld [vmem:[#allocation2 + $0x54] sm:$0x1]
        %v317 = vsel %vm285, 0, %v316
        %318 = vst [vmem:[#allocation2 + $0x54] sm:$0x1] %v317
        %v319 = vld [vmem:[#allocation2 + $0x5c] sm:$0x1]
        %v320 = vsel %vm285, 0, %v319
        %321 = vst [vmem:[#allocation2 + $0x5c] sm:$0x1] %v320
        %v322 = vld [vmem:[#allocation2 + $0x64] sm:$0x1]
        %v323 = vsel %vm285, 0, %v322
        %324 = vst [vmem:[#allocation2 + $0x64] sm:$0x1] %v323
        %v325 = vld [vmem:[#allocation2 + $0x6c] sm:$0x1]
        %v326 = vsel %vm285, 0, %v325
        %327 = vst [vmem:[#allocation2 + $0x6c] sm:$0x1] %v326
        %v328 = vld [vmem:[#allocation2 + $0x74] sm:$0x1]
        %v329 = vsel %vm285, 0, %v328
        %330 = vst [vmem:[#allocation2 + $0x74] sm:$0x1] %v329
        %v331 = vld [vmem:[#allocation2 + $0x7c] sm:$0x1]
        %v332 = vsel %vm285, 0, %v331
        %333 = vst [vmem:[#allocation2 + $0x7c] sm:$0x1] %v332
        %v334 = vld [vmem:[#allocation2 + $0x84] sm:$0x1]
        %v335 = vsel %vm285, 0, %v334
        %336 = vst [vmem:[#allocation2 + $0x84] sm:$0x1] %v335
        %v337 = vld [vmem:[#allocation2 + $0x8c] sm:$0x1]
        %v338 = vsel %vm285, 0, %v337
        %339 = vst [vmem:[#allocation2 + $0x8c] sm:$0x1] %v338
        %v340 = vld [vmem:[#allocation2 + $0x94] sm:$0x1]
        %v341 = vsel %vm285, 0, %v340
        %342 = vst [vmem:[#allocation2 + $0x94] sm:$0x1] %v341
        %v343 = vld [vmem:[#allocation2 + $0x9c] sm:$0x1]
        %v344 = vsel %vm285, 0, %v343
        %345 = vst [vmem:[#allocation2 + $0x9c] sm:$0x1] %v344
        %v346 = vld [vmem:[#allocation2 + $0xa4] sm:$0x1]
        %v347 = vsel %vm285, 0, %v346
        %348 = vst [vmem:[#allocation2 + $0xa4] sm:$0x1] %v347
        %v349 = vld [vmem:[#allocation2 + $0xac] sm:$0x1]
        %v350 = vsel %vm285, 0, %v349
        %351 = vst [vmem:[#allocation2 + $0xac] sm:$0x1] %v350
        %v352 = vld [vmem:[#allocation2 + $0xb4] sm:$0x1]
        %v353 = vsel %vm285, 0, %v352
        %354 = vst [vmem:[#allocation2 + $0xb4] sm:$0x1] %v353
        %v355 = vld [vmem:[#allocation2 + $0xbc] sm:$0x1]
        %v356 = vsel %vm285, 0, %v355
        %357 = vst [vmem:[#allocation2 + $0xbc] sm:$0x1] %v356
        %v358 = vld [vmem:[#allocation2 + $0xc4] sm:$0x1]
        %v359 = vsel %vm285, 0, %v358
        %360 = vst [vmem:[#allocation2 + $0xc4] sm:$0x1] %v359
        %v361 = vld [vmem:[#allocation2 + $0xcc] sm:$0x1]
        %v362 = vsel %vm285, 0, %v361
        %363 = vst [vmem:[#allocation2 + $0xcc] sm:$0x1] %v362
        %v364 = vld [vmem:[#allocation2 + $0xd4] sm:$0x1]
        %v365 = vsel %vm285, 0, %v364
        %366 = vst [vmem:[#allocation2 + $0xd4] sm:$0x1] %v365
        %v367 = vld [vmem:[#allocation2 + $0xdc] sm:$0x1]
        %v368 = vsel %vm285, 0, %v367
        %369 = vst [vmem:[#allocation2 + $0xdc] sm:$0x1] %v368
        %v370 = vld [vmem:[#allocation2 + $0xe4] sm:$0x1]
        %v371 = vsel %vm285, 0, %v370
        %372 = vst [vmem:[#allocation2 + $0xe4] sm:$0x1] %v371
        %v373 = vld [vmem:[#allocation2 + $0xec] sm:$0x1]
        %v374 = vsel %vm285, 0, %v373
        %375 = vst [vmem:[#allocation2 + $0xec] sm:$0x1] %v374
        %v376 = vld [vmem:[%s172] sm:$0xf]
        %v377 = vld [vmem:[%s172 + $0x4] sm:$0xf]
        %v378 = vld [vmem:[%s172 + $0x8] sm:$0xf]
        %v379 = vld [vmem:[%s172 + $0xc] sm:$0xf]
        %v380 = vld [vmem:[%s172 + $0x10] sm:$0xf]
        %v381 = vld [vmem:[%s172 + $0x14] sm:$0xf]
        %v382 = vld [vmem:[%s172 + $0x18] sm:$0xf]
        %v383 = vld [vmem:[%s172 + $0x1c] sm:$0xf]
        %v384 = vld [vmem:[%s172 + $0x20] sm:$0xf]
        %v385 = vld [vmem:[%s172 + $0x24] sm:$0xf]
        %v386 = vld [vmem:[%s172 + $0x28] sm:$0xf]
        %v387 = vld [vmem:[%s172 + $0x2c] sm:$0xf]
        %v388 = vld [vmem:[%s172 + $0x30] sm:$0xf]
        %v389 = vld [vmem:[%s172 + $0x34] sm:$0xf]
        %v390 = vld [vmem:[%s172 + $0x38] sm:$0xf]
        %v391 = vld [vmem:[%s172 + $0x3c] sm:$0xf]
        %v392 = vld [vmem:[%s172 + $0x40] sm:$0xf]
        %v393 = vld [vmem:[%s172 + $0x44] sm:$0xf]
        %v394 = vld [vmem:[%s172 + $0x48] sm:$0xf]
        %v395 = vld [vmem:[%s172 + $0x4c] sm:$0xf]
        %v396 = vld [vmem:[%s172 + $0x50] sm:$0xf]
        %v397 = vld [vmem:[%s172 + $0x54] sm:$0xf]
        %v398 = vld [vmem:[%s172 + $0x58] sm:$0xf]
        %v399 = vld [vmem:[%s172 + $0x5c] sm:$0xf]
        %v401 = vshrl.u32 %v376, 16
        %v403 = vrot.slane %v401, 7
        %v404 = vshll.u32 %v376, 16
        %v406 = vor.u32 %v403, %v404
        %v407 = vrot.slane %v403, 4
        %v409 = vshrl.u32 %v377, 16
        %v411 = vrot.slane %v409, 7
        %v412 = vshll.u32 %v377, 16
        %v414 = vor.u32 %v411, %v412
        %v415 = vrot.slane %v411, 4
        %v417 = vshrl.u32 %v378, 16
        %v419 = vrot.slane %v417, 7
        %v420 = vshll.u32 %v378, 16
        %v422 = vor.u32 %v419, %v420
        %v423 = vrot.slane %v419, 4
        %v425 = vshrl.u32 %v379, 16
        %v427 = vrot.slane %v425, 7
        %v428 = vshll.u32 %v379, 16
        %v430 = vor.u32 %v427, %v428
        %v431 = vrot.slane %v427, 4
        %v433 = vshrl.u32 %v380, 16
        %v435 = vrot.slane %v433, 7
        %v436 = vshll.u32 %v380, 16
        %v438 = vor.u32 %v435, %v436
        %v439 = vrot.slane %v435, 4
        %v441 = vshrl.u32 %v381, 16
        %v443 = vrot.slane %v441, 7
        %v444 = vshll.u32 %v381, 16
        %v446 = vor.u32 %v443, %v444
        %v447 = vrot.slane %v443, 4
        %v449 = vshrl.u32 %v382, 16
        %v451 = vrot.slane %v449, 7
        %v452 = vshll.u32 %v382, 16
        %v454 = vor.u32 %v451, %v452
        %v455 = vrot.slane %v451, 4
        %v457 = vshrl.u32 %v383, 16
        %v459 = vrot.slane %v457, 7
        %v460 = vshll.u32 %v383, 16
        %v462 = vor.u32 %v459, %v460
        %v463 = vrot.slane %v459, 4
        %v465 = vshrl.u32 %v384, 16
        %v467 = vrot.slane %v465, 7
        %v468 = vshll.u32 %v384, 16
        %v470 = vor.u32 %v467, %v468
        %v471 = vrot.slane %v467, 4
        %v473 = vshrl.u32 %v385, 16
        %v475 = vrot.slane %v473, 7
        %v476 = vshll.u32 %v385, 16
        %v478 = vor.u32 %v475, %v476
        %v479 = vrot.slane %v475, 4
        %v481 = vshrl.u32 %v386, 16
        %v483 = vrot.slane %v481, 7
        %v484 = vshll.u32 %v386, 16
        %v486 = vor.u32 %v483, %v484
        %v487 = vrot.slane %v483, 4
        %v489 = vshrl.u32 %v387, 16
        %v491 = vrot.slane %v489, 7
        %v492 = vshll.u32 %v387, 16
        %v494 = vor.u32 %v491, %v492
        %v495 = vrot.slane %v491, 4
        %v497 = vshrl.u32 %v388, 16
        %v499 = vrot.slane %v497, 7
        %v500 = vshll.u32 %v388, 16
        %v502 = vor.u32 %v499, %v500
        %v503 = vrot.slane %v499, 4
        %v505 = vshrl.u32 %v389, 16
        %v507 = vrot.slane %v505, 7
        %v508 = vshll.u32 %v389, 16
        %v510 = vor.u32 %v507, %v508
        %v511 = vrot.slane %v507, 4
        %v513 = vshrl.u32 %v390, 16
        %v515 = vrot.slane %v513, 7
        %v516 = vshll.u32 %v390, 16
        %v518 = vor.u32 %v515, %v516
        %v519 = vrot.slane %v515, 4
        %v521 = vshrl.u32 %v391, 16
        %v523 = vrot.slane %v521, 7
        %v524 = vshll.u32 %v391, 16
        %v526 = vor.u32 %v523, %v524
        %v527 = vrot.slane %v523, 4
        %v529 = vshrl.u32 %v392, 16
        %v531 = vrot.slane %v529, 7
        %v532 = vshll.u32 %v392, 16
        %v534 = vor.u32 %v531, %v532
        %v535 = vrot.slane %v531, 4
        %v537 = vshrl.u32 %v393, 16
        %v539 = vrot.slane %v537, 7
        %v540 = vshll.u32 %v393, 16
        %v542 = vor.u32 %v539, %v540
        %v543 = vrot.slane %v539, 4
        %v545 = vshrl.u32 %v394, 16
        %v547 = vrot.slane %v545, 7
        %v548 = vshll.u32 %v394, 16
        %v550 = vor.u32 %v547, %v548
        %v551 = vrot.slane %v547, 4
        %v553 = vshrl.u32 %v395, 16
        %v555 = vrot.slane %v553, 7
        %v556 = vshll.u32 %v395, 16
        %v558 = vor.u32 %v555, %v556
        %v559 = vrot.slane %v555, 4
        %v561 = vshrl.u32 %v396, 16
        %v563 = vrot.slane %v561, 7
        %v564 = vshll.u32 %v396, 16
        %v566 = vor.u32 %v563, %v564
        %v567 = vrot.slane %v563, 4
        %v569 = vshrl.u32 %v397, 16
        %v571 = vrot.slane %v569, 7
        %v572 = vshll.u32 %v397, 16
        %v574 = vor.u32 %v571, %v572
        %v575 = vrot.slane %v571, 4
        %v577 = vshrl.u32 %v398, 16
        %v579 = vrot.slane %v577, 7
        %v580 = vshll.u32 %v398, 16
        %v582 = vor.u32 %v579, %v580
        %v583 = vrot.slane %v579, 4
        %v585 = vshrl.u32 %v399, 16
        %v587 = vrot.slane %v585, 7
        %v588 = vshll.u32 %v399, 16
        %v590 = vor.u32 %v587, %v588
        %v591 = vrot.slane %v587, 4
        %s640 = scalar_lea.vmem [#allocation2], 8
        %vm641 = vcmask 27648
        %vm642 = vmand %vm641, %vm284
        %v643 = vld [vmem:[%s640] sm:$0xf]
        %v644 = vsel %vm642, %v406, %v643
        %645 = vst [vmem:[%s640] sm:$0xf] %v644
        %v646 = vld [vmem:[%s640 + $0x4] sm:$0x1]
        %v647 = vsel %vm193, %v407, %v646
        %648 = vst [vmem:[%s640 + $0x4] sm:$0x1] %v647
        %v649 = vld [vmem:[%s640 + $0x8] sm:$0xf]
        %v650 = vsel %vm642, %v414, %v649
        %651 = vst [vmem:[%s640 + $0x8] sm:$0xf] %v650
        %v652 = vld [vmem:[%s640 + $0xc] sm:$0x1]
        %v653 = vsel %vm193, %v415, %v652
        %654 = vst [vmem:[%s640 + $0xc] sm:$0x1] %v653
        %v655 = vld [vmem:[%s640 + $0x10] sm:$0xf]
        %v656 = vsel %vm642, %v422, %v655
        %657 = vst [vmem:[%s640 + $0x10] sm:$0xf] %v656
        %v658 = vld [vmem:[%s640 + $0x14] sm:$0x1]
        %v659 = vsel %vm193, %v423, %v658
        %660 = vst [vmem:[%s640 + $0x14] sm:$0x1] %v659
        %v661 = vld [vmem:[%s640 + $0x18] sm:$0xf]
        %v662 = vsel %vm642, %v430, %v661
        %663 = vst [vmem:[%s640 + $0x18] sm:$0xf] %v662
        %v664 = vld [vmem:[%s640 + $0x1c] sm:$0x1]
        %v665 = vsel %vm193, %v431, %v664
        %666 = vst [vmem:[%s640 + $0x1c] sm:$0x1] %v665
        %v667 = vld [vmem:[%s640 + $0x20] sm:$0xf]
        %v668 = vsel %vm642, %v438, %v667
        %669 = vst [vmem:[%s640 + $0x20] sm:$0xf] %v668
        %v670 = vld [vmem:[%s640 + $0x24] sm:$0x1]
        %v671 = vsel %vm193, %v439, %v670
        %672 = vst [vmem:[%s640 + $0x24] sm:$0x1] %v671
        %v673 = vld [vmem:[%s640 + $0x28] sm:$0xf]
        %v674 = vsel %vm642, %v446, %v673
        %675 = vst [vmem:[%s640 + $0x28] sm:$0xf] %v674
        %v676 = vld [vmem:[%s640 + $0x2c] sm:$0x1]
        %v677 = vsel %vm193, %v447, %v676
        %678 = vst [vmem:[%s640 + $0x2c] sm:$0x1] %v677
        %v679 = vld [vmem:[%s640 + $0x30] sm:$0xf]
        %v680 = vsel %vm642, %v454, %v679
        %681 = vst [vmem:[%s640 + $0x30] sm:$0xf] %v680
        %v682 = vld [vmem:[%s640 + $0x34] sm:$0x1]
        %v683 = vsel %vm193, %v455, %v682
        %684 = vst [vmem:[%s640 + $0x34] sm:$0x1] %v683
        %v685 = vld [vmem:[%s640 + $0x38] sm:$0xf]
        %v686 = vsel %vm642, %v462, %v685
        %687 = vst [vmem:[%s640 + $0x38] sm:$0xf] %v686
        %v688 = vld [vmem:[%s640 + $0x3c] sm:$0x1]
        %v689 = vsel %vm193, %v463, %v688
        %690 = vst [vmem:[%s640 + $0x3c] sm:$0x1] %v689
        %v691 = vld [vmem:[%s640 + $0x50] sm:$0xf]
        %v692 = vsel %vm642, %v470, %v691
        %693 = vst [vmem:[%s640 + $0x50] sm:$0xf] %v692
        %v694 = vld [vmem:[%s640 + $0x54] sm:$0x1]
        %v695 = vsel %vm193, %v471, %v694
        %696 = vst [vmem:[%s640 + $0x54] sm:$0x1] %v695
        %v697 = vld [vmem:[%s640 + $0x58] sm:$0xf]
        %v698 = vsel %vm642, %v478, %v697
        %699 = vst [vmem:[%s640 + $0x58] sm:$0xf] %v698
        %v700 = vld [vmem:[%s640 + $0x5c] sm:$0x1]
        %v701 = vsel %vm193, %v479, %v700
        %702 = vst [vmem:[%s640 + $0x5c] sm:$0x1] %v701
        %v703 = vld [vmem:[%s640 + $0x60] sm:$0xf]
        %v704 = vsel %vm642, %v486, %v703
        %705 = vst [vmem:[%s640 + $0x60] sm:$0xf] %v704
        %v706 = vld [vmem:[%s640 + $0x64] sm:$0x1]
        %v707 = vsel %vm193, %v487, %v706
        %708 = vst [vmem:[%s640 + $0x64] sm:$0x1] %v707
        %v709 = vld [vmem:[%s640 + $0x68] sm:$0xf]
        %v710 = vsel %vm642, %v494, %v709
        %711 = vst [vmem:[%s640 + $0x68] sm:$0xf] %v710
        %v712 = vld [vmem:[%s640 + $0x6c] sm:$0x1]
        %v713 = vsel %vm193, %v495, %v712
        %714 = vst [vmem:[%s640 + $0x6c] sm:$0x1] %v713
        %v715 = vld [vmem:[%s640 + $0x70] sm:$0xf]
        %v716 = vsel %vm642, %v502, %v715
        %717 = vst [vmem:[%s640 + $0x70] sm:$0xf] %v716
        %v718 = vld [vmem:[%s640 + $0x74] sm:$0x1]
        %v719 = vsel %vm193, %v503, %v718
        %720 = vst [vmem:[%s640 + $0x74] sm:$0x1] %v719
        %v721 = vld [vmem:[%s640 + $0x78] sm:$0xf]
        %v722 = vsel %vm642, %v510, %v721
        %723 = vst [vmem:[%s640 + $0x78] sm:$0xf] %v722
        %v724 = vld [vmem:[%s640 + $0x7c] sm:$0x1]
        %v725 = vsel %vm193, %v511, %v724
        %726 = vst [vmem:[%s640 + $0x7c] sm:$0x1] %v725
        %v727 = vld [vmem:[%s640 + $0x80] sm:$0xf]
        %v728 = vsel %vm642, %v518, %v727
        %729 = vst [vmem:[%s640 + $0x80] sm:$0xf] %v728
        %v730 = vld [vmem:[%s640 + $0x84] sm:$0x1]
        %v731 = vsel %vm193, %v519, %v730
        %732 = vst [vmem:[%s640 + $0x84] sm:$0x1] %v731
        %v733 = vld [vmem:[%s640 + $0x88] sm:$0xf]
        %v734 = vsel %vm642, %v526, %v733
        %735 = vst [vmem:[%s640 + $0x88] sm:$0xf] %v734
        %v736 = vld [vmem:[%s640 + $0x8c] sm:$0x1]
        %v737 = vsel %vm193, %v527, %v736
        %738 = vst [vmem:[%s640 + $0x8c] sm:$0x1] %v737
        %v739 = vld [vmem:[%s640 + $0xa0] sm:$0xf]
        %v740 = vsel %vm642, %v534, %v739
        %741 = vst [vmem:[%s640 + $0xa0] sm:$0xf] %v740
        %v742 = vld [vmem:[%s640 + $0xa4] sm:$0x1]
        %v743 = vsel %vm193, %v535, %v742
        %744 = vst [vmem:[%s640 + $0xa4] sm:$0x1] %v743
        %v745 = vld [vmem:[%s640 + $0xa8] sm:$0xf]
        %v746 = vsel %vm642, %v542, %v745
        %747 = vst [vmem:[%s640 + $0xa8] sm:$0xf] %v746
        %v748 = vld [vmem:[%s640 + $0xac] sm:$0x1]
        %v749 = vsel %vm193, %v543, %v748
        %750 = vst [vmem:[%s640 + $0xac] sm:$0x1] %v749
        %v751 = vld [vmem:[%s640 + $0xb0] sm:$0xf]
        %v752 = vsel %vm642, %v550, %v751
        %753 = vst [vmem:[%s640 + $0xb0] sm:$0xf] %v752
        %v754 = vld [vmem:[%s640 + $0xb4] sm:$0x1]
        %v755 = vsel %vm193, %v551, %v754
        %756 = vst [vmem:[%s640 + $0xb4] sm:$0x1] %v755
        %v757 = vld [vmem:[%s640 + $0xb8] sm:$0xf]
        %v758 = vsel %vm642, %v558, %v757
        %759 = vst [vmem:[%s640 + $0xb8] sm:$0xf] %v758
        %v760 = vld [vmem:[%s640 + $0xbc] sm:$0x1]
        %v761 = vsel %vm193, %v559, %v760
        %762 = vst [vmem:[%s640 + $0xbc] sm:$0x1] %v761
        %v763 = vld [vmem:[%s640 + $0xc0] sm:$0xf]
        %v764 = vsel %vm642, %v566, %v763
        %765 = vst [vmem:[%s640 + $0xc0] sm:$0xf] %v764
        %v766 = vld [vmem:[%s640 + $0xc4] sm:$0x1]
        %v767 = vsel %vm193, %v567, %v766
        %768 = vst [vmem:[%s640 + $0xc4] sm:$0x1] %v767
        %v769 = vld [vmem:[%s640 + $0xc8] sm:$0xf]
        %v770 = vsel %vm642, %v574, %v769
        %771 = vst [vmem:[%s640 + $0xc8] sm:$0xf] %v770
        %v772 = vld [vmem:[%s640 + $0xcc] sm:$0x1]
        %v773 = vsel %vm193, %v575, %v772
        %774 = vst [vmem:[%s640 + $0xcc] sm:$0x1] %v773
        %v775 = vld [vmem:[%s640 + $0xd0] sm:$0xf]
        %v776 = vsel %vm642, %v582, %v775
        %777 = vst [vmem:[%s640 + $0xd0] sm:$0xf] %v776
        %v778 = vld [vmem:[%s640 + $0xd4] sm:$0x1]
        %v779 = vsel %vm193, %v583, %v778
        %780 = vst [vmem:[%s640 + $0xd4] sm:$0x1] %v779
        %v781 = vld [vmem:[%s640 + $0xd8] sm:$0xf]
        %v782 = vsel %vm642, %v590, %v781
        %783 = vst [vmem:[%s640 + $0xd8] sm:$0xf] %v782
        %v784 = vld [vmem:[%s640 + $0xdc] sm:$0x1]
        %v785 = vsel %vm193, %v591, %v784
        %786 = vst [vmem:[%s640 + $0xdc] sm:$0x1] %v785
        %v787 = vld [vmem:[#allocation2] sm:$0xf]
        %v788 = vld [vmem:[#allocation2 + $0x4] sm:$0x1]
        %v789 = vld [vmem:[#allocation2 + $0x8] sm:$0xf]
        %v790 = vld [vmem:[#allocation2 + $0xc] sm:$0x1]
        %v791 = vld [vmem:[#allocation2 + $0x10] sm:$0xf]
        %v792 = vld [vmem:[#allocation2 + $0x14] sm:$0x1]
        %v793 = vld [vmem:[#allocation2 + $0x18] sm:$0xf]
        %v794 = vld [vmem:[#allocation2 + $0x1c] sm:$0x1]
        %v795 = vld [vmem:[#allocation2 + $0x20] sm:$0xf]
        %v796 = vld [vmem:[#allocation2 + $0x24] sm:$0x1]
        %v797 = vld [vmem:[#allocation2 + $0x28] sm:$0xf]
        %v798 = vld [vmem:[#allocation2 + $0x2c] sm:$0x1]
        %v799 = vld [vmem:[#allocation2 + $0x30] sm:$0xf]
        %v800 = vld [vmem:[#allocation2 + $0x34] sm:$0x1]
        %v801 = vld [vmem:[#allocation2 + $0x38] sm:$0xf]
        %v802 = vld [vmem:[#allocation2 + $0x3c] sm:$0x1]
        %v803 = vld [vmem:[#allocation2 + $0x40] sm:$0xf]
        %v804 = vld [vmem:[#allocation2 + $0x44] sm:$0x1]
        %v805 = vld [vmem:[#allocation2 + $0x48] sm:$0xf]
        %v806 = vld [vmem:[#allocation2 + $0x4c] sm:$0x1]
        %v807 = vld [vmem:[#allocation2 + $0x50] sm:$0xf]
        %v808 = vld [vmem:[#allocation2 + $0x54] sm:$0x1]
        %v809 = vld [vmem:[#allocation2 + $0x58] sm:$0xf]
        %v810 = vld [vmem:[#allocation2 + $0x5c] sm:$0x1]
        %v811 = vld [vmem:[#allocation2 + $0x60] sm:$0xf]
        %v812 = vld [vmem:[#allocation2 + $0x64] sm:$0x1]
        %v813 = vld [vmem:[#allocation2 + $0x68] sm:$0xf]
        %v814 = vld [vmem:[#allocation2 + $0x6c] sm:$0x1]
        %v815 = vld [vmem:[#allocation2 + $0x70] sm:$0xf]
        %v816 = vld [vmem:[#allocation2 + $0x74] sm:$0x1]
        %v817 = vld [vmem:[#allocation2 + $0x78] sm:$0xf]
        %v818 = vld [vmem:[#allocation2 + $0x7c] sm:$0x1]
        %v819 = vld [vmem:[#allocation2 + $0x80] sm:$0xf]
        %v820 = vld [vmem:[#allocation2 + $0x84] sm:$0x1]
        %v821 = vld [vmem:[#allocation2 + $0x88] sm:$0xf]
        %v822 = vld [vmem:[#allocation2 + $0x8c] sm:$0x1]
        %v823 = vld [vmem:[#allocation2 + $0x90] sm:$0xf]
        %v824 = vld [vmem:[#allocation2 + $0x94] sm:$0x1]
        %v825 = vld [vmem:[#allocation2 + $0x98] sm:$0xf]
        %v826 = vld [vmem:[#allocation2 + $0x9c] sm:$0x1]
        %v827 = vld [vmem:[#allocation2 + $0xa0] sm:$0xf]
        %v828 = vld [vmem:[#allocation2 + $0xa4] sm:$0x1]
        %v829 = vld [vmem:[#allocation2 + $0xa8] sm:$0xf]
        %v830 = vld [vmem:[#allocation2 + $0xac] sm:$0x1]
        %v831 = vld [vmem:[#allocation2 + $0xb0] sm:$0xf]
        %v832 = vld [vmem:[#allocation2 + $0xb4] sm:$0x1]
        %v833 = vld [vmem:[#allocation2 + $0xb8] sm:$0xf]
        %v834 = vld [vmem:[#allocation2 + $0xbc] sm:$0x1]
        %v835 = vld [vmem:[#allocation2 + $0xc0] sm:$0xf]
        %v836 = vld [vmem:[#allocation2 + $0xc4] sm:$0x1]
        %v837 = vld [vmem:[#allocation2 + $0xc8] sm:$0xf]
        %v838 = vld [vmem:[#allocation2 + $0xcc] sm:$0x1]
        %v839 = vld [vmem:[#allocation2 + $0xd0] sm:$0xf]
        %v840 = vld [vmem:[#allocation2 + $0xd4] sm:$0x1]
        %v841 = vld [vmem:[#allocation2 + $0xd8] sm:$0xf]
        %v842 = vld [vmem:[#allocation2 + $0xdc] sm:$0x1]
        %v843 = vld [vmem:[#allocation2 + $0xe0] sm:$0xf]
        %v844 = vld [vmem:[#allocation2 + $0xe4] sm:$0x1]
        %v845 = vld [vmem:[#allocation2 + $0xe8] sm:$0xf]
        %v846 = vld [vmem:[#allocation2 + $0xec] sm:$0x1]
        %v895 = vunpack.c.l.b16 %v787
        %v896 = vunpack.c.l.b16 %v788
        %v897 = vunpack.c.l.b16 %v789
        %v898 = vunpack.c.l.b16 %v790
        %v899 = vunpack.c.l.b16 %v791
        %v900 = vunpack.c.l.b16 %v792
        %v901 = vunpack.c.l.b16 %v793
        %v902 = vunpack.c.l.b16 %v794
        %v903 = vunpack.c.l.b16 %v795
        %v904 = vunpack.c.l.b16 %v796
        %v905 = vunpack.c.l.b16 %v797
        %v906 = vunpack.c.l.b16 %v798
        %v907 = vunpack.c.l.b16 %v799
        %v908 = vunpack.c.l.b16 %v800
        %v909 = vunpack.c.l.b16 %v801
        %v910 = vunpack.c.l.b16 %v802
        %v911 = vunpack.c.l.b16 %v807
        %v912 = vunpack.c.l.b16 %v808
        %v913 = vunpack.c.l.b16 %v809
        %v914 = vunpack.c.l.b16 %v810
        %v915 = vunpack.c.l.b16 %v811
        %v916 = vunpack.c.l.b16 %v812
        %v917 = vunpack.c.l.b16 %v813
        %v918 = vunpack.c.l.b16 %v814
        %v919 = vunpack.c.l.b16 %v815
        %v920 = vunpack.c.l.b16 %v816
        %v921 = vunpack.c.l.b16 %v817
        %v922 = vunpack.c.l.b16 %v818
        %v923 = vunpack.c.l.b16 %v819
        %v924 = vunpack.c.l.b16 %v820
        %v925 = vunpack.c.l.b16 %v821
        %v926 = vunpack.c.l.b16 %v822
        %v927 = vunpack.c.l.b16 %v827
        %v928 = vunpack.c.l.b16 %v828
        %v929 = vunpack.c.l.b16 %v829
        %v930 = vunpack.c.l.b16 %v830
        %v931 = vunpack.c.l.b16 %v831
        %v932 = vunpack.c.l.b16 %v832
        %v933 = vunpack.c.l.b16 %v833
        %v934 = vunpack.c.l.b16 %v834
        %v935 = vunpack.c.l.b16 %v835
        %v936 = vunpack.c.l.b16 %v836
        %v937 = vunpack.c.l.b16 %v837
        %v938 = vunpack.c.l.b16 %v838
        %v939 = vunpack.c.l.b16 %v839
        %v940 = vunpack.c.l.b16 %v840
        %v941 = vunpack.c.l.b16 %v841
        %v942 = vunpack.c.l.b16 %v842
        %v943 = vpack.c.b16 %v896, %v895
        %v944 = vpack.c.b16 %v898, %v897
        %v945 = vpack.c.b16 %v900, %v899
        %v946 = vpack.c.b16 %v902, %v901
        %v947 = vpack.c.b16 %v904, %v903
        %v948 = vpack.c.b16 %v906, %v905
        %v949 = vpack.c.b16 %v908, %v907
        %v950 = vpack.c.b16 %v910, %v909
        %v951 = vpack.c.b16 %v912, %v911
        %v952 = vpack.c.b16 %v914, %v913
        %v953 = vpack.c.b16 %v916, %v915
        %v954 = vpack.c.b16 %v918, %v917
        %v955 = vpack.c.b16 %v920, %v919
        %v956 = vpack.c.b16 %v922, %v921
        %v957 = vpack.c.b16 %v924, %v923
        %v958 = vpack.c.b16 %v926, %v925
        %v959 = vpack.c.b16 %v928, %v927
        %v960 = vpack.c.b16 %v930, %v929
        %v961 = vpack.c.b16 %v932, %v931
        %v962 = vpack.c.b16 %v934, %v933
        %v963 = vpack.c.b16 %v936, %v935
        %v964 = vpack.c.b16 %v938, %v937
        %v965 = vpack.c.b16 %v940, %v939
        %v966 = vpack.c.b16 %v942, %v941
        %v968 = vshrl.u32 %v943, 16
        %v970 = vshll.u32 %v943, 16
        %v972 = vrot.slane %v970, 1
        %v973 = vor.u32 %v968, %v972
        %v975 = vshrl.u32 %v944, 16
        %v977 = vshll.u32 %v944, 16
        %v979 = vrot.slane %v977, 1
        %v980 = vor.u32 %v975, %v979
        %v982 = vshrl.u32 %v945, 16
        %v984 = vshll.u32 %v945, 16
        %v986 = vrot.slane %v984, 1
        %v987 = vor.u32 %v982, %v986
        %v989 = vshrl.u32 %v946, 16
        %v991 = vshll.u32 %v946, 16
        %v993 = vrot.slane %v991, 1
        %v994 = vor.u32 %v989, %v993
        %v996 = vshrl.u32 %v947, 16
        %v998 = vshll.u32 %v947, 16
        %v1000 = vrot.slane %v998, 1
        %v1001 = vor.u32 %v996, %v1000
        %v1003 = vshrl.u32 %v948, 16
        %v1005 = vshll.u32 %v948, 16
        %v1007 = vrot.slane %v1005, 1
        %v1008 = vor.u32 %v1003, %v1007
        %v1010 = vshrl.u32 %v949, 16
        %v1012 = vshll.u32 %v949, 16
        %v1014 = vrot.slane %v1012, 1
        %v1015 = vor.u32 %v1010, %v1014
        %v1017 = vshrl.u32 %v950, 16
        %v1019 = vshll.u32 %v950, 16
        %v1021 = vrot.slane %v1019, 1
        %v1022 = vor.u32 %v1017, %v1021
        %v1024 = vshrl.u32 %v951, 16
        %v1026 = vshll.u32 %v951, 16
        %v1028 = vrot.slane %v1026, 1
        %v1029 = vor.u32 %v1024, %v1028
        %v1031 = vshrl.u32 %v952, 16
        %v1033 = vshll.u32 %v952, 16
        %v1035 = vrot.slane %v1033, 1
        %v1036 = vor.u32 %v1031, %v1035
        %v1038 = vshrl.u32 %v953, 16
        %v1040 = vshll.u32 %v953, 16
        %v1042 = vrot.slane %v1040, 1
        %v1043 = vor.u32 %v1038, %v1042
        %v1045 = vshrl.u32 %v954, 16
        %v1047 = vshll.u32 %v954, 16
        %v1049 = vrot.slane %v1047, 1
        %v1050 = vor.u32 %v1045, %v1049
        %v1052 = vshrl.u32 %v955, 16
        %v1054 = vshll.u32 %v955, 16
        %v1056 = vrot.slane %v1054, 1
        %v1057 = vor.u32 %v1052, %v1056
        %v1059 = vshrl.u32 %v956, 16
        %v1061 = vshll.u32 %v956, 16
        %v1063 = vrot.slane %v1061, 1
        %v1064 = vor.u32 %v1059, %v1063
        %v1066 = vshrl.u32 %v957, 16
        %v1068 = vshll.u32 %v957, 16
        %v1070 = vrot.slane %v1068, 1
        %v1071 = vor.u32 %v1066, %v1070
        %v1073 = vshrl.u32 %v958, 16
        %v1075 = vshll.u32 %v958, 16
        %v1077 = vrot.slane %v1075, 1
        %v1078 = vor.u32 %v1073, %v1077
        %v1080 = vshrl.u32 %v959, 16
        %v1082 = vshll.u32 %v959, 16
        %v1084 = vrot.slane %v1082, 1
        %v1085 = vor.u32 %v1080, %v1084
        %v1087 = vshrl.u32 %v960, 16
        %v1089 = vshll.u32 %v960, 16
        %v1091 = vrot.slane %v1089, 1
        %v1092 = vor.u32 %v1087, %v1091
        %v1094 = vshrl.u32 %v961, 16
        %v1096 = vshll.u32 %v961, 16
        %v1098 = vrot.slane %v1096, 1
        %v1099 = vor.u32 %v1094, %v1098
        %v1101 = vshrl.u32 %v962, 16
        %v1103 = vshll.u32 %v962, 16
        %v1105 = vrot.slane %v1103, 1
        %v1106 = vor.u32 %v1101, %v1105
        %v1108 = vshrl.u32 %v963, 16
        %v1110 = vshll.u32 %v963, 16
        %v1112 = vrot.slane %v1110, 1
        %v1113 = vor.u32 %v1108, %v1112
        %v1115 = vshrl.u32 %v964, 16
        %v1117 = vshll.u32 %v964, 16
        %v1119 = vrot.slane %v1117, 1
        %v1120 = vor.u32 %v1115, %v1119
        %v1122 = vshrl.u32 %v965, 16
        %v1124 = vshll.u32 %v965, 16
        %v1126 = vrot.slane %v1124, 1
        %v1127 = vor.u32 %v1122, %v1126
        %v1129 = vshrl.u32 %v966, 16
        %v1131 = vshll.u32 %v966, 16
        %v1133 = vrot.slane %v1131, 1
        %v1134 = vor.u32 %v1129, %v1133
        %1135 = vrot.lane.b32.xlu0 %v973, 4
        %v1136 = vpop.permute.xlu0 %1135
        %1137 = vrot.lane.b32.xlu0 %v980, 4
        %v1138 = vpop.permute.xlu0 %1137
        %1139 = vrot.lane.b32.xlu0 %v987, 4
        %v1140 = vpop.permute.xlu0 %1139
        %1141 = vrot.lane.b32.xlu0 %v994, 4
        %v1142 = vpop.permute.xlu0 %1141
        %1143 = vrot.lane.b32.xlu0 %v1001, 4
        %v1144 = vpop.permute.xlu0 %1143
        %1145 = vrot.lane.b32.xlu0 %v1008, 4
        %v1146 = vpop.permute.xlu0 %1145
        %1147 = vrot.lane.b32.xlu0 %v1015, 4
        %v1148 = vpop.permute.xlu0 %1147
        %1149 = vrot.lane.b32.xlu0 %v1022, 4
        %v1150 = vpop.permute.xlu0 %1149
        %1151 = vrot.lane.b32.xlu0 %v1029, 4
        %v1152 = vpop.permute.xlu0 %1151
        %1153 = vrot.lane.b32.xlu0 %v1036, 4
        %v1154 = vpop.permute.xlu0 %1153
        %1155 = vrot.lane.b32.xlu0 %v1043, 4
        %v1156 = vpop.permute.xlu0 %1155
        %1157 = vrot.lane.b32.xlu0 %v1050, 4
        %v1158 = vpop.permute.xlu0 %1157
        %1159 = vrot.lane.b32.xlu0 %v1057, 4
        %v1160 = vpop.permute.xlu0 %1159
        %1161 = vrot.lane.b32.xlu0 %v1064, 4
        %v1162 = vpop.permute.xlu0 %1161
        %1163 = vrot.lane.b32.xlu0 %v1071, 4
        %v1164 = vpop.permute.xlu0 %1163
        %1165 = vrot.lane.b32.xlu0 %v1078, 4
        %v1166 = vpop.permute.xlu0 %1165
        %1167 = vrot.lane.b32.xlu0 %v1085, 4
        %v1168 = vpop.permute.xlu0 %1167
        %1169 = vrot.lane.b32.xlu0 %v1092, 4
        %v1170 = vpop.permute.xlu0 %1169
        %1171 = vrot.lane.b32.xlu0 %v1099, 4
        %v1172 = vpop.permute.xlu0 %1171
        %1173 = vrot.lane.b32.xlu0 %v1106, 4
        %v1174 = vpop.permute.xlu0 %1173
        %1175 = vrot.lane.b32.xlu0 %v1113, 4
        %v1176 = vpop.permute.xlu0 %1175
        %1177 = vrot.lane.b32.xlu0 %v1120, 4
        %v1178 = vpop.permute.xlu0 %1177
        %1179 = vrot.lane.b32.xlu0 %v1127, 4
        %v1180 = vpop.permute.xlu0 %1179
        %1181 = vrot.lane.b32.xlu0 %v1134, 4
        %v1182 = vpop.permute.xlu0 %1181
        %v1183 = vrot.slane %v943, 1
        %v1184 = vrot.slane %v944, 1
        %v1185 = vrot.slane %v945, 1
        %v1186 = vrot.slane %v946, 1
        %v1187 = vrot.slane %v947, 1
        %v1188 = vrot.slane %v948, 1
        %v1189 = vrot.slane %v949, 1
        %v1190 = vrot.slane %v950, 1
        %v1191 = vrot.slane %v951, 1
        %v1192 = vrot.slane %v952, 1
        %v1193 = vrot.slane %v953, 1
        %v1194 = vrot.slane %v954, 1
        %v1195 = vrot.slane %v955, 1
        %v1196 = vrot.slane %v956, 1
        %v1197 = vrot.slane %v957, 1
        %v1198 = vrot.slane %v958, 1
        %v1199 = vrot.slane %v959, 1
        %v1200 = vrot.slane %v960, 1
        %v1201 = vrot.slane %v961, 1
        %v1202 = vrot.slane %v962, 1
        %v1203 = vrot.slane %v963, 1
        %v1204 = vrot.slane %v964, 1
        %v1205 = vrot.slane %v965, 1
        %v1206 = vrot.slane %v966, 1
        %1207 = vrot.lane.b32.xlu0 %v1183, 8
        %v1208 = vpop.permute.xlu0 %1207
        %1209 = vrot.lane.b32.xlu0 %v1184, 8
        %v1210 = vpop.permute.xlu0 %1209
        %1211 = vrot.lane.b32.xlu0 %v1185, 8
        %v1212 = vpop.permute.xlu0 %1211
        %1213 = vrot.lane.b32.xlu0 %v1186, 8
        %v1214 = vpop.permute.xlu0 %1213
        %1215 = vrot.lane.b32.xlu0 %v1187, 8
        %v1216 = vpop.permute.xlu0 %1215
        %1217 = vrot.lane.b32.xlu0 %v1188, 8
        %v1218 = vpop.permute.xlu0 %1217
        %1219 = vrot.lane.b32.xlu0 %v1189, 8
        %v1220 = vpop.permute.xlu0 %1219
        %1221 = vrot.lane.b32.xlu0 %v1190, 8
        %v1222 = vpop.permute.xlu0 %1221
        %1223 = vrot.lane.b32.xlu0 %v1191, 8
        %v1224 = vpop.permute.xlu0 %1223
        %1225 = vrot.lane.b32.xlu0 %v1192, 8
        %v1226 = vpop.permute.xlu0 %1225
        %1227 = vrot.lane.b32.xlu0 %v1193, 8
        %v1228 = vpop.permute.xlu0 %1227
        %1229 = vrot.lane.b32.xlu0 %v1194, 8
        %v1230 = vpop.permute.xlu0 %1229
        %1231 = vrot.lane.b32.xlu0 %v1195, 8
        %v1232 = vpop.permute.xlu0 %1231
        %1233 = vrot.lane.b32.xlu0 %v1196, 8
        %v1234 = vpop.permute.xlu0 %1233
        %1235 = vrot.lane.b32.xlu0 %v1197, 8
        %v1236 = vpop.permute.xlu0 %1235
        %1237 = vrot.lane.b32.xlu0 %v1198, 8
        %v1238 = vpop.permute.xlu0 %1237
        %1239 = vrot.lane.b32.xlu0 %v1199, 8
        %v1240 = vpop.permute.xlu0 %1239
        %1241 = vrot.lane.b32.xlu0 %v1200, 8
        %v1242 = vpop.permute.xlu0 %1241
        %1243 = vrot.lane.b32.xlu0 %v1201, 8
        %v1244 = vpop.permute.xlu0 %1243
        %1245 = vrot.lane.b32.xlu0 %v1202, 8
        %v1246 = vpop.permute.xlu0 %1245
        %1247 = vrot.lane.b32.xlu0 %v1203, 8
        %v1248 = vpop.permute.xlu0 %1247
        %1249 = vrot.lane.b32.xlu0 %v1204, 8
        %v1250 = vpop.permute.xlu0 %1249
        %1251 = vrot.lane.b32.xlu0 %v1205, 8
        %v1252 = vpop.permute.xlu0 %1251
        %1253 = vrot.lane.b32.xlu0 %v1206, 8
        %v1254 = vpop.permute.xlu0 %1253
        %v1258 = vunpack.c.l.b16 %v803
        %v1259 = vunpack.c.l.b16 %v823
        %v1260 = vunpack.c.l.b16 %v843
        %v1261 = vpack.c.b16 %v897, %v897
        %v1262 = vpack.c.b16 %v899, %v899
        %v1263 = vpack.c.b16 %v901, %v901
        %v1264 = vpack.c.b16 %v903, %v903
        %v1265 = vpack.c.b16 %v905, %v905
        %v1266 = vpack.c.b16 %v907, %v907
        %v1267 = vpack.c.b16 %v909, %v909
        %v1268 = vpack.c.b16 %v1258, %v1258
        %v1269 = vpack.c.b16 %v913, %v913
        %v1270 = vpack.c.b16 %v915, %v915
        %v1271 = vpack.c.b16 %v917, %v917
        %v1272 = vpack.c.b16 %v919, %v919
        %v1273 = vpack.c.b16 %v921, %v921
        %v1274 = vpack.c.b16 %v923, %v923
        %v1275 = vpack.c.b16 %v925, %v925
        %v1276 = vpack.c.b16 %v1259, %v1259
        %v1277 = vpack.c.b16 %v929, %v929
        %v1278 = vpack.c.b16 %v931, %v931
        %v1279 = vpack.c.b16 %v933, %v933
        %v1280 = vpack.c.b16 %v935, %v935
        %v1281 = vpack.c.b16 %v937, %v937
        %v1282 = vpack.c.b16 %v939, %v939
        %v1283 = vpack.c.b16 %v941, %v941
        %v1284 = vpack.c.b16 %v1260, %v1260
        %1285 = vrot.lane.b32.xlu0 %v1261, 12
        %v1286 = vpop.permute.xlu0 %1285
        %1287 = vrot.lane.b32.xlu0 %v1262, 12
        %v1288 = vpop.permute.xlu0 %1287
        %1289 = vrot.lane.b32.xlu0 %v1263, 12
        %v1290 = vpop.permute.xlu0 %1289
        %1291 = vrot.lane.b32.xlu0 %v1264, 12
        %v1292 = vpop.permute.xlu0 %1291
        %1293 = vrot.lane.b32.xlu0 %v1265, 12
        %v1294 = vpop.permute.xlu0 %1293
        %1295 = vrot.lane.b32.xlu0 %v1266, 12
        %v1296 = vpop.permute.xlu0 %1295
        %1297 = vrot.lane.b32.xlu0 %v1267, 12
        %v1298 = vpop.permute.xlu0 %1297
        %1299 = vrot.lane.b32.xlu0 %v1268, 12
        %v1300 = vpop.permute.xlu0 %1299
        %1301 = vrot.lane.b32.xlu0 %v1269, 12
        %v1302 = vpop.permute.xlu0 %1301
        %1303 = vrot.lane.b32.xlu0 %v1270, 12
        %v1304 = vpop.permute.xlu0 %1303
        %1305 = vrot.lane.b32.xlu0 %v1271, 12
        %v1306 = vpop.permute.xlu0 %1305
        %1307 = vrot.lane.b32.xlu0 %v1272, 12
        %v1308 = vpop.permute.xlu0 %1307
        %1309 = vrot.lane.b32.xlu0 %v1273, 12
        %v1310 = vpop.permute.xlu0 %1309
        %1311 = vrot.lane.b32.xlu0 %v1274, 12
        %v1312 = vpop.permute.xlu0 %1311
        %1313 = vrot.lane.b32.xlu0 %v1275, 12
        %v1314 = vpop.permute.xlu0 %1313
        %1315 = vrot.lane.b32.xlu0 %v1276, 12
        %v1316 = vpop.permute.xlu0 %1315
        %1317 = vrot.lane.b32.xlu0 %v1277, 12
        %v1318 = vpop.permute.xlu0 %1317
        %1319 = vrot.lane.b32.xlu0 %v1278, 12
        %v1320 = vpop.permute.xlu0 %1319
        %1321 = vrot.lane.b32.xlu0 %v1279, 12
        %v1322 = vpop.permute.xlu0 %1321
        %1323 = vrot.lane.b32.xlu0 %v1280, 12
        %v1324 = vpop.permute.xlu0 %1323
        %1325 = vrot.lane.b32.xlu0 %v1281, 12
        %v1326 = vpop.permute.xlu0 %1325
        %1327 = vrot.lane.b32.xlu0 %v1282, 12
        %v1328 = vpop.permute.xlu0 %1327
        %1329 = vrot.lane.b32.xlu0 %v1283, 12
        %v1330 = vpop.permute.xlu0 %1329
        %1331 = vrot.lane.b32.xlu0 %v1284, 12
        %v1332 = vpop.permute.xlu0 %1331
        %v1336 = vunpack.c.l.b16 %v804
        %v1337 = vunpack.c.l.b16 %v824
        %v1338 = vunpack.c.l.b16 %v844
        %v1339 = vpack.c.b16 %v1336, %v1258
        %v1340 = vpack.c.b16 %v1337, %v1259
        %v1341 = vpack.c.b16 %v1338, %v1260
        %v1343 = vshrl.u32 %v1339, 16
        %v1345 = vshll.u32 %v1339, 16
        %v1347 = vrot.slane %v1345, 1
        %v1348 = vor.u32 %v1343, %v1347
        %v1350 = vshrl.u32 %v1340, 16
        %v1352 = vshll.u32 %v1340, 16
        %v1354 = vrot.slane %v1352, 1
        %v1355 = vor.u32 %v1350, %v1354
        %v1357 = vshrl.u32 %v1341, 16
        %v1359 = vshll.u32 %v1341, 16
        %v1361 = vrot.slane %v1359, 1
        %v1362 = vor.u32 %v1357, %v1361
        %1363 = vrot.lane.b32.xlu0 %v980, 16
        %v1364 = vpop.permute.xlu0 %1363
        %1365 = vrot.lane.b32.xlu0 %v987, 16
        %v1366 = vpop.permute.xlu0 %1365
        %1367 = vrot.lane.b32.xlu0 %v994, 16
        %v1368 = vpop.permute.xlu0 %1367
        %1369 = vrot.lane.b32.xlu0 %v1001, 16
        %v1370 = vpop.permute.xlu0 %1369
        %1371 = vrot.lane.b32.xlu0 %v1008, 16
        %v1372 = vpop.permute.xlu0 %1371
        %1373 = vrot.lane.b32.xlu0 %v1015, 16
        %v1374 = vpop.permute.xlu0 %1373
        %1375 = vrot.lane.b32.xlu0 %v1022, 16
        %v1376 = vpop.permute.xlu0 %1375
        %1377 = vrot.lane.b32.xlu0 %v1348, 16
        %v1378 = vpop.permute.xlu0 %1377
        %1379 = vrot.lane.b32.xlu0 %v1036, 16
        %v1380 = vpop.permute.xlu0 %1379
        %1381 = vrot.lane.b32.xlu0 %v1043, 16
        %v1382 = vpop.permute.xlu0 %1381
        %1383 = vrot.lane.b32.xlu0 %v1050, 16
        %v1384 = vpop.permute.xlu0 %1383
        %1385 = vrot.lane.b32.xlu0 %v1057, 16
        %v1386 = vpop.permute.xlu0 %1385
        %1387 = vrot.lane.b32.xlu0 %v1064, 16
        %v1388 = vpop.permute.xlu0 %1387
        %1389 = vrot.lane.b32.xlu0 %v1071, 16
        %v1390 = vpop.permute.xlu0 %1389
        %1391 = vrot.lane.b32.xlu0 %v1078, 16
        %v1392 = vpop.permute.xlu0 %1391
        %1393 = vrot.lane.b32.xlu0 %v1355, 16
        %v1394 = vpop.permute.xlu0 %1393
        %1395 = vrot.lane.b32.xlu0 %v1092, 16
        %v1396 = vpop.permute.xlu0 %1395
        %1397 = vrot.lane.b32.xlu0 %v1099, 16
        %v1398 = vpop.permute.xlu0 %1397
        %1399 = vrot.lane.b32.xlu0 %v1106, 16
        %v1400 = vpop.permute.xlu0 %1399
        %1401 = vrot.lane.b32.xlu0 %v1113, 16
        %v1402 = vpop.permute.xlu0 %1401
        %1403 = vrot.lane.b32.xlu0 %v1120, 16
        %v1404 = vpop.permute.xlu0 %1403
        %1405 = vrot.lane.b32.xlu0 %v1127, 16
        %v1406 = vpop.permute.xlu0 %1405
        %1407 = vrot.lane.b32.xlu0 %v1134, 16
        %v1408 = vpop.permute.xlu0 %1407
        %1409 = vrot.lane.b32.xlu0 %v1362, 16
        %v1410 = vpop.permute.xlu0 %1409
        %v1411 = vrot.slane %v1339, 1
        %v1412 = vrot.slane %v1340, 1
        %v1413 = vrot.slane %v1341, 1
        %1414 = vrot.lane.b32.xlu0 %v1184, 20
        %v1415 = vpop.permute.xlu0 %1414
        %1416 = vrot.lane.b32.xlu0 %v1185, 20
        %v1417 = vpop.permute.xlu0 %1416
        %1418 = vrot.lane.b32.xlu0 %v1186, 20
        %v1419 = vpop.permute.xlu0 %1418
        %1420 = vrot.lane.b32.xlu0 %v1187, 20
        %v1421 = vpop.permute.xlu0 %1420
        %1422 = vrot.lane.b32.xlu0 %v1188, 20
        %v1423 = vpop.permute.xlu0 %1422
        %1424 = vrot.lane.b32.xlu0 %v1189, 20
        %v1425 = vpop.permute.xlu0 %1424
        %1426 = vrot.lane.b32.xlu0 %v1190, 20
        %v1427 = vpop.permute.xlu0 %1426
        %1428 = vrot.lane.b32.xlu0 %v1411, 20
        %v1429 = vpop.permute.xlu0 %1428
        %1430 = vrot.lane.b32.xlu0 %v1192, 20
        %v1431 = vpop.permute.xlu0 %1430
        %1432 = vrot.lane.b32.xlu0 %v1193, 20
        %v1433 = vpop.permute.xlu0 %1432
        %1434 = vrot.lane.b32.xlu0 %v1194, 20
        %v1435 = vpop.permute.xlu0 %1434
        %1436 = vrot.lane.b32.xlu0 %v1195, 20
        %v1437 = vpop.permute.xlu0 %1436
        %1438 = vrot.lane.b32.xlu0 %v1196, 20
        %v1439 = vpop.permute.xlu0 %1438
        %1440 = vrot.lane.b32.xlu0 %v1197, 20
        %v1441 = vpop.permute.xlu0 %1440
        %1442 = vrot.lane.b32.xlu0 %v1198, 20
        %v1443 = vpop.permute.xlu0 %1442
        %1444 = vrot.lane.b32.xlu0 %v1412, 20
        %v1445 = vpop.permute.xlu0 %1444
        %1446 = vrot.lane.b32.xlu0 %v1200, 20
        %v1447 = vpop.permute.xlu0 %1446
        %1448 = vrot.lane.b32.xlu0 %v1201, 20
        %v1449 = vpop.permute.xlu0 %1448
        %1450 = vrot.lane.b32.xlu0 %v1202, 20
        %v1451 = vpop.permute.xlu0 %1450
        %1452 = vrot.lane.b32.xlu0 %v1203, 20
        %v1453 = vpop.permute.xlu0 %1452
        %1454 = vrot.lane.b32.xlu0 %v1204, 20
        %v1455 = vpop.permute.xlu0 %1454
        %1456 = vrot.lane.b32.xlu0 %v1205, 20
        %v1457 = vpop.permute.xlu0 %1456
        %1458 = vrot.lane.b32.xlu0 %v1206, 20
        %v1459 = vpop.permute.xlu0 %1458
        %1460 = vrot.lane.b32.xlu0 %v1413, 20
        %v1461 = vpop.permute.xlu0 %1460
        %v1465 = vunpack.c.l.b16 %v805
        %v1466 = vunpack.c.l.b16 %v825
        %v1467 = vunpack.c.l.b16 %v845
        %v1468 = vpack.c.b16 %v1465, %v1465
        %v1469 = vpack.c.b16 %v1466, %v1466
        %v1470 = vpack.c.b16 %v1467, %v1467
        %1471 = vrot.lane.b32.xlu0 %v1262, 24
        %v1472 = vpop.permute.xlu0 %1471
        %1473 = vrot.lane.b32.xlu0 %v1263, 24
        %v1474 = vpop.permute.xlu0 %1473
        %1475 = vrot.lane.b32.xlu0 %v1264, 24
        %v1476 = vpop.permute.xlu0 %1475
        %1477 = vrot.lane.b32.xlu0 %v1265, 24
        %v1478 = vpop.permute.xlu0 %1477
        %1479 = vrot.lane.b32.xlu0 %v1266, 24
        %v1480 = vpop.permute.xlu0 %1479
        %1481 = vrot.lane.b32.xlu0 %v1267, 24
        %v1482 = vpop.permute.xlu0 %1481
        %1483 = vrot.lane.b32.xlu0 %v1268, 24
        %v1484 = vpop.permute.xlu0 %1483
        %1485 = vrot.lane.b32.xlu0 %v1468, 24
        %v1486 = vpop.permute.xlu0 %1485
        %1487 = vrot.lane.b32.xlu0 %v1270, 24
        %v1488 = vpop.permute.xlu0 %1487
        %1489 = vrot.lane.b32.xlu0 %v1271, 24
        %v1490 = vpop.permute.xlu0 %1489
        %1491 = vrot.lane.b32.xlu0 %v1272, 24
        %v1492 = vpop.permute.xlu0 %1491
        %1493 = vrot.lane.b32.xlu0 %v1273, 24
        %v1494 = vpop.permute.xlu0 %1493
        %1495 = vrot.lane.b32.xlu0 %v1274, 24
        %v1496 = vpop.permute.xlu0 %1495
        %1497 = vrot.lane.b32.xlu0 %v1275, 24
        %v1498 = vpop.permute.xlu0 %1497
        %1499 = vrot.lane.b32.xlu0 %v1276, 24
        %v1500 = vpop.permute.xlu0 %1499
        %1501 = vrot.lane.b32.xlu0 %v1469, 24
        %v1502 = vpop.permute.xlu0 %1501
        %1503 = vrot.lane.b32.xlu0 %v1278, 24
        %v1504 = vpop.permute.xlu0 %1503
        %1505 = vrot.lane.b32.xlu0 %v1279, 24
        %v1506 = vpop.permute.xlu0 %1505
        %1507 = vrot.lane.b32.xlu0 %v1280, 24
        %v1508 = vpop.permute.xlu0 %1507
        %1509 = vrot.lane.b32.xlu0 %v1281, 24
        %v1510 = vpop.permute.xlu0 %1509
        %1511 = vrot.lane.b32.xlu0 %v1282, 24
        %v1512 = vpop.permute.xlu0 %1511
        %1513 = vrot.lane.b32.xlu0 %v1283, 24
        %v1514 = vpop.permute.xlu0 %1513
        %1515 = vrot.lane.b32.xlu0 %v1284, 24
        %v1516 = vpop.permute.xlu0 %1515
        %1517 = vrot.lane.b32.xlu0 %v1470, 24
        %v1518 = vpop.permute.xlu0 %1517
        %v1522 = vunpack.c.l.b16 %v806
        %v1523 = vunpack.c.l.b16 %v826
        %v1524 = vunpack.c.l.b16 %v846
        %v1525 = vpack.c.b16 %v1522, %v1465
        %v1526 = vpack.c.b16 %v1523, %v1466
        %v1527 = vpack.c.b16 %v1524, %v1467
        %v1529 = vshrl.u32 %v1525, 16
        %v1531 = vshll.u32 %v1525, 16
        %v1533 = vrot.slane %v1531, 1
        %v1534 = vor.u32 %v1529, %v1533
        %v1536 = vshrl.u32 %v1526, 16
        %v1538 = vshll.u32 %v1526, 16
        %v1540 = vrot.slane %v1538, 1
        %v1541 = vor.u32 %v1536, %v1540
        %v1543 = vshrl.u32 %v1527, 16
        %v1545 = vshll.u32 %v1527, 16
        %v1547 = vrot.slane %v1545, 1
        %v1548 = vor.u32 %v1543, %v1547
        %1549 = vrot.lane.b32.xlu0 %v987, 28
        %v1550 = vpop.permute.xlu0 %1549
        %1551 = vrot.lane.b32.xlu0 %v994, 28
        %v1552 = vpop.permute.xlu0 %1551
        %1553 = vrot.lane.b32.xlu0 %v1001, 28
        %v1554 = vpop.permute.xlu0 %1553
        %1555 = vrot.lane.b32.xlu0 %v1008, 28
        %v1556 = vpop.permute.xlu0 %1555
        %1557 = vrot.lane.b32.xlu0 %v1015, 28
        %v1558 = vpop.permute.xlu0 %1557
        %1559 = vrot.lane.b32.xlu0 %v1022, 28
        %v1560 = vpop.permute.xlu0 %1559
        %1561 = vrot.lane.b32.xlu0 %v1348, 28
        %v1562 = vpop.permute.xlu0 %1561
        %1563 = vrot.lane.b32.xlu0 %v1534, 28
        %v1564 = vpop.permute.xlu0 %1563
        %1565 = vrot.lane.b32.xlu0 %v1043, 28
        %v1566 = vpop.permute.xlu0 %1565
        %1567 = vrot.lane.b32.xlu0 %v1050, 28
        %v1568 = vpop.permute.xlu0 %1567
        %1569 = vrot.lane.b32.xlu0 %v1057, 28
        %v1570 = vpop.permute.xlu0 %1569
        %1571 = vrot.lane.b32.xlu0 %v1064, 28
        %v1572 = vpop.permute.xlu0 %1571
        %1573 = vrot.lane.b32.xlu0 %v1071, 28
        %v1574 = vpop.permute.xlu0 %1573
        %1575 = vrot.lane.b32.xlu0 %v1078, 28
        %v1576 = vpop.permute.xlu0 %1575
        %1577 = vrot.lane.b32.xlu0 %v1355, 28
        %v1578 = vpop.permute.xlu0 %1577
        %1579 = vrot.lane.b32.xlu0 %v1541, 28
        %v1580 = vpop.permute.xlu0 %1579
        %1581 = vrot.lane.b32.xlu0 %v1099, 28
        %v1582 = vpop.permute.xlu0 %1581
        %1583 = vrot.lane.b32.xlu0 %v1106, 28
        %v1584 = vpop.permute.xlu0 %1583
        %1585 = vrot.lane.b32.xlu0 %v1113, 28
        %v1586 = vpop.permute.xlu0 %1585
        %1587 = vrot.lane.b32.xlu0 %v1120, 28
        %v1588 = vpop.permute.xlu0 %1587
        %1589 = vrot.lane.b32.xlu0 %v1127, 28
        %v1590 = vpop.permute.xlu0 %1589
        %1591 = vrot.lane.b32.xlu0 %v1134, 28
        %v1592 = vpop.permute.xlu0 %1591
        %1593 = vrot.lane.b32.xlu0 %v1362, 28
        %v1594 = vpop.permute.xlu0 %1593
        %1595 = vrot.lane.b32.xlu0 %v1548, 28
        %v1596 = vpop.permute.xlu0 %1595
        %v1597 = vrot.slane %v1525, 1
        %v1598 = vrot.slane %v1526, 1
        %v1599 = vrot.slane %v1527, 1
        %1600 = vrot.lane.b32.xlu0 %v1185, 32
        %v1601 = vpop.permute.xlu0 %1600
        %1602 = vrot.lane.b32.xlu0 %v1186, 32
        %v1603 = vpop.permute.xlu0 %1602
        %1604 = vrot.lane.b32.xlu0 %v1187, 32
        %v1605 = vpop.permute.xlu0 %1604
        %1606 = vrot.lane.b32.xlu0 %v1188, 32
        %v1607 = vpop.permute.xlu0 %1606
        %1608 = vrot.lane.b32.xlu0 %v1189, 32
        %v1609 = vpop.permute.xlu0 %1608
        %1610 = vrot.lane.b32.xlu0 %v1190, 32
        %v1611 = vpop.permute.xlu0 %1610
        %1612 = vrot.lane.b32.xlu0 %v1411, 32
        %v1613 = vpop.permute.xlu0 %1612
        %1614 = vrot.lane.b32.xlu0 %v1597, 32
        %v1615 = vpop.permute.xlu0 %1614
        %1616 = vrot.lane.b32.xlu0 %v1193, 32
        %v1617 = vpop.permute.xlu0 %1616
        %1618 = vrot.lane.b32.xlu0 %v1194, 32
        %v1619 = vpop.permute.xlu0 %1618
        %1620 = vrot.lane.b32.xlu0 %v1195, 32
        %v1621 = vpop.permute.xlu0 %1620
        %1622 = vrot.lane.b32.xlu0 %v1196, 32
        %v1623 = vpop.permute.xlu0 %1622
        %1624 = vrot.lane.b32.xlu0 %v1197, 32
        %v1625 = vpop.permute.xlu0 %1624
        %1626 = vrot.lane.b32.xlu0 %v1198, 32
        %v1627 = vpop.permute.xlu0 %1626
        %1628 = vrot.lane.b32.xlu0 %v1412, 32
        %v1629 = vpop.permute.xlu0 %1628
        %1630 = vrot.lane.b32.xlu0 %v1598, 32
        %v1631 = vpop.permute.xlu0 %1630
        %1632 = vrot.lane.b32.xlu0 %v1201, 32
        %v1633 = vpop.permute.xlu0 %1632
        %1634 = vrot.lane.b32.xlu0 %v1202, 32
        %v1635 = vpop.permute.xlu0 %1634
        %1636 = vrot.lane.b32.xlu0 %v1203, 32
        %v1637 = vpop.permute.xlu0 %1636
        %1638 = vrot.lane.b32.xlu0 %v1204, 32
        %v1639 = vpop.permute.xlu0 %1638
        %1640 = vrot.lane.b32.xlu0 %v1205, 32
        %v1641 = vpop.permute.xlu0 %1640
        %1642 = vrot.lane.b32.xlu0 %v1206, 32
        %v1643 = vpop.permute.xlu0 %1642
        %1644 = vrot.lane.b32.xlu0 %v1413, 32
        %v1645 = vpop.permute.xlu0 %1644
        %1646 = vrot.lane.b32.xlu0 %v1599, 32
        %v1647 = vpop.permute.xlu0 %1646
        %vm1648 = vcmask 31744
        %v1651 = vsel %vm1648, %v787, %v1136
        %v1654 = vsel %vm1648, %v789, %v1138
        %v1657 = vsel %vm1648, %v791, %v1140
        %v1660 = vsel %vm1648, %v793, %v1142
        %v1663 = vsel %vm1648, %v795, %v1144
        %v1666 = vsel %vm1648, %v797, %v1146
        %v1669 = vsel %vm1648, %v799, %v1148
        %v1672 = vsel %vm1648, %v801, %v1150
        %v1675 = vsel %vm1648, %v807, %v1152
        %v1678 = vsel %vm1648, %v809, %v1154
        %v1681 = vsel %vm1648, %v811, %v1156
        %v1684 = vsel %vm1648, %v813, %v1158
        %v1687 = vsel %vm1648, %v815, %v1160
        %v1690 = vsel %vm1648, %v817, %v1162
        %v1693 = vsel %vm1648, %v819, %v1164
        %v1696 = vsel %vm1648, %v821, %v1166
        %v1699 = vsel %vm1648, %v827, %v1168
        %v1702 = vsel %vm1648, %v829, %v1170
        %v1705 = vsel %vm1648, %v831, %v1172
        %v1708 = vsel %vm1648, %v833, %v1174
        %v1711 = vsel %vm1648, %v835, %v1176
        %v1714 = vsel %vm1648, %v837, %v1178
        %v1717 = vsel %vm1648, %v839, %v1180
        %v1720 = vsel %vm1648, %v841, %v1182
        %vm1721 = vcmask 64512
        %v1723 = vsel %vm1721, %v1651, %v1208
        %v1725 = vsel %vm1721, %v1654, %v1210
        %v1727 = vsel %vm1721, %v1657, %v1212
        %v1729 = vsel %vm1721, %v1660, %v1214
        %v1731 = vsel %vm1721, %v1663, %v1216
        %v1733 = vsel %vm1721, %v1666, %v1218
        %v1735 = vsel %vm1721, %v1669, %v1220
        %v1737 = vsel %vm1721, %v1672, %v1222
        %v1739 = vsel %vm1721, %v1675, %v1224
        %v1741 = vsel %vm1721, %v1678, %v1226
        %v1743 = vsel %vm1721, %v1681, %v1228
        %v1745 = vsel %vm1721, %v1684, %v1230
        %v1747 = vsel %vm1721, %v1687, %v1232
        %v1749 = vsel %vm1721, %v1690, %v1234
        %v1751 = vsel %vm1721, %v1693, %v1236
        %v1753 = vsel %vm1721, %v1696, %v1238
        %v1755 = vsel %vm1721, %v1699, %v1240
        %v1757 = vsel %vm1721, %v1702, %v1242
        %v1759 = vsel %vm1721, %v1705, %v1244
        %v1761 = vsel %vm1721, %v1708, %v1246
        %v1763 = vsel %vm1721, %v1711, %v1248
        %v1765 = vsel %vm1721, %v1714, %v1250
        %v1767 = vsel %vm1721, %v1717, %v1252
        %v1769 = vsel %vm1721, %v1720, %v1254
        %vm1770 = vcmask 97280
        %v1772 = vsel %vm1770, %v1723, %v1286
        %v1774 = vsel %vm1770, %v1725, %v1288
        %v1776 = vsel %vm1770, %v1727, %v1290
        %v1778 = vsel %vm1770, %v1729, %v1292
        %v1780 = vsel %vm1770, %v1731, %v1294
        %v1782 = vsel %vm1770, %v1733, %v1296
        %v1784 = vsel %vm1770, %v1735, %v1298
        %v1786 = vsel %vm1770, %v1737, %v1300
        %v1788 = vsel %vm1770, %v1739, %v1302
        %v1790 = vsel %vm1770, %v1741, %v1304
        %v1792 = vsel %vm1770, %v1743, %v1306
        %v1794 = vsel %vm1770, %v1745, %v1308
        %v1796 = vsel %vm1770, %v1747, %v1310
        %v1798 = vsel %vm1770, %v1749, %v1312
        %v1800 = vsel %vm1770, %v1751, %v1314
        %v1802 = vsel %vm1770, %v1753, %v1316
        %v1804 = vsel %vm1770, %v1755, %v1318
        %v1806 = vsel %vm1770, %v1757, %v1320
        %v1808 = vsel %vm1770, %v1759, %v1322
        %v1810 = vsel %vm1770, %v1761, %v1324
        %v1812 = vsel %vm1770, %v1763, %v1326
        %v1814 = vsel %vm1770, %v1765, %v1328
        %v1816 = vsel %vm1770, %v1767, %v1330
        %v1818 = vsel %vm1770, %v1769, %v1332
        %vm1819 = vcmask 130048
        %v1821 = vsel %vm1819, %v1772, %v1364
        %v1823 = vsel %vm1819, %v1774, %v1366
        %v1825 = vsel %vm1819, %v1776, %v1368
        %v1827 = vsel %vm1819, %v1778, %v1370
        %v1829 = vsel %vm1819, %v1780, %v1372
        %v1831 = vsel %vm1819, %v1782, %v1374
        %v1833 = vsel %vm1819, %v1784, %v1376
        %v1835 = vsel %vm1819, %v1786, %v1378
        %v1837 = vsel %vm1819, %v1788, %v1380
        %v1839 = vsel %vm1819, %v1790, %v1382
        %v1841 = vsel %vm1819, %v1792, %v1384
        %v1843 = vsel %vm1819, %v1794, %v1386
        %v1845 = vsel %vm1819, %v1796, %v1388
        %v1847 = vsel %vm1819, %v1798, %v1390
        %v1849 = vsel %vm1819, %v1800, %v1392
        %v1851 = vsel %vm1819, %v1802, %v1394
        %v1853 = vsel %vm1819, %v1804, %v1396
        %v1855 = vsel %vm1819, %v1806, %v1398
        %v1857 = vsel %vm1819, %v1808, %v1400
        %v1859 = vsel %vm1819, %v1810, %v1402
        %v1861 = vsel %vm1819, %v1812, %v1404
        %v1863 = vsel %vm1819, %v1814, %v1406
        %v1865 = vsel %vm1819, %v1816, %v1408
        %v1867 = vsel %vm1819, %v1818, %v1410
        %vm1868 = vcmask 162816
        %v1870 = vsel %vm1868, %v1821, %v1415
        %v1872 = vsel %vm1868, %v1823, %v1417
        %v1874 = vsel %vm1868, %v1825, %v1419
        %v1876 = vsel %vm1868, %v1827, %v1421
        %v1878 = vsel %vm1868, %v1829, %v1423
        %v1880 = vsel %vm1868, %v1831, %v1425
        %v1882 = vsel %vm1868, %v1833, %v1427
        %v1884 = vsel %vm1868, %v1835, %v1429
        %v1886 = vsel %vm1868, %v1837, %v1431
        %v1888 = vsel %vm1868, %v1839, %v1433
        %v1890 = vsel %vm1868, %v1841, %v1435
        %v1892 = vsel %vm1868, %v1843, %v1437
        %v1894 = vsel %vm1868, %v1845, %v1439
        %v1896 = vsel %vm1868, %v1847, %v1441
        %v1898 = vsel %vm1868, %v1849, %v1443
        %v1900 = vsel %vm1868, %v1851, %v1445
        %v1902 = vsel %vm1868, %v1853, %v1447
        %v1904 = vsel %vm1868, %v1855, %v1449
        %v1906 = vsel %vm1868, %v1857, %v1451
        %v1908 = vsel %vm1868, %v1859, %v1453
        %v1910 = vsel %vm1868, %v1861, %v1455
        %v1912 = vsel %vm1868, %v1863, %v1457
        %v1914 = vsel %vm1868, %v1865, %v1459
        %v1916 = vsel %vm1868, %v1867, %v1461
        %vm1917 = vcmask 195584
        %v1919 = vsel %vm1917, %v1870, %v1472
        %v1921 = vsel %vm1917, %v1872, %v1474
        %v1923 = vsel %vm1917, %v1874, %v1476
        %v1925 = vsel %vm1917, %v1876, %v1478
        %v1927 = vsel %vm1917, %v1878, %v1480
        %v1929 = vsel %vm1917, %v1880, %v1482
        %v1931 = vsel %vm1917, %v1882, %v1484
        %v1933 = vsel %vm1917, %v1884, %v1486
        %v1935 = vsel %vm1917, %v1886, %v1488
        %v1937 = vsel %vm1917, %v1888, %v1490
        %v1939 = vsel %vm1917, %v1890, %v1492
        %v1941 = vsel %vm1917, %v1892, %v1494
        %v1943 = vsel %vm1917, %v1894, %v1496
        %v1945 = vsel %vm1917, %v1896, %v1498
        %v1947 = vsel %vm1917, %v1898, %v1500
        %v1949 = vsel %vm1917, %v1900, %v1502
        %v1951 = vsel %vm1917, %v1902, %v1504
        %v1953 = vsel %vm1917, %v1904, %v1506
        %v1955 = vsel %vm1917, %v1906, %v1508
        %v1957 = vsel %vm1917, %v1908, %v1510
        %v1959 = vsel %vm1917, %v1910, %v1512
        %v1961 = vsel %vm1917, %v1912, %v1514
        %v1963 = vsel %vm1917, %v1914, %v1516
        %v1965 = vsel %vm1917, %v1916, %v1518
        %vm1966 = vcmask 228352
        %v1968 = vsel %vm1966, %v1919, %v1550
        %v1970 = vsel %vm1966, %v1921, %v1552
        %v1972 = vsel %vm1966, %v1923, %v1554
        %v1974 = vsel %vm1966, %v1925, %v1556
        %v1976 = vsel %vm1966, %v1927, %v1558
        %v1978 = vsel %vm1966, %v1929, %v1560
        %v1980 = vsel %vm1966, %v1931, %v1562
        %v1982 = vsel %vm1966, %v1933, %v1564
        %v1984 = vsel %vm1966, %v1935, %v1566
        %v1986 = vsel %vm1966, %v1937, %v1568
        %v1988 = vsel %vm1966, %v1939, %v1570
        %v1990 = vsel %vm1966, %v1941, %v1572
        %v1992 = vsel %vm1966, %v1943, %v1574
        %v1994 = vsel %vm1966, %v1945, %v1576
        %v1996 = vsel %vm1966, %v1947, %v1578
        %v1998 = vsel %vm1966, %v1949, %v1580
        %v2000 = vsel %vm1966, %v1951, %v1582
        %v2002 = vsel %vm1966, %v1953, %v1584
        %v2004 = vsel %vm1966, %v1955, %v1586
        %v2006 = vsel %vm1966, %v1957, %v1588
        %v2008 = vsel %vm1966, %v1959, %v1590
        %v2010 = vsel %vm1966, %v1961, %v1592
        %v2012 = vsel %vm1966, %v1963, %v1594
        %v2014 = vsel %vm1966, %v1965, %v1596
        %vm2015 = vcmask 261120
        %v2017 = vsel %vm2015, %v1968, %v1601
        %v2019 = vsel %vm2015, %v1970, %v1603
        %v2021 = vsel %vm2015, %v1972, %v1605
        %v2023 = vsel %vm2015, %v1974, %v1607
        %v2025 = vsel %vm2015, %v1976, %v1609
        %v2027 = vsel %vm2015, %v1978, %v1611
        %v2029 = vsel %vm2015, %v1980, %v1613
        %v2031 = vsel %vm2015, %v1982, %v1615
        %v2033 = vsel %vm2015, %v1984, %v1617
        %v2035 = vsel %vm2015, %v1986, %v1619
        %v2037 = vsel %vm2015, %v1988, %v1621
        %v2039 = vsel %vm2015, %v1990, %v1623
        %v2041 = vsel %vm2015, %v1992, %v1625
        %v2043 = vsel %vm2015, %v1994, %v1627
        %v2045 = vsel %vm2015, %v1996, %v1629
        %v2047 = vsel %vm2015, %v1998, %v1631
        %v2049 = vsel %vm2015, %v2000, %v1633
        %v2051 = vsel %vm2015, %v2002, %v1635
        %v2053 = vsel %vm2015, %v2004, %v1637
        %v2055 = vsel %vm2015, %v2006, %v1639
        %v2057 = vsel %vm2015, %v2008, %v1641
        %v2059 = vsel %vm2015, %v2010, %v1643
        %v2061 = vsel %vm2015, %v2012, %v1645
        %v2063 = vsel %vm2015, %v2014, %v1647
        %v2064 = vld [vmem:[%s1] sm:$0xf]
        %v2065 = vld [vmem:[%s1 + $0x4] sm:$0xf]
        %v2066 = vld [vmem:[%s1 + $0x8] sm:$0xf]
        %v2067 = vld [vmem:[%s1 + $0xc] sm:$0xf]
        %v2068 = vld [vmem:[%s1 + $0x10] sm:$0x3]
        %v2093 = vunpack.c.l.b16 %v2017
        %v2094 = vunpack.c.l.b16 %v2019
        %v2095 = vunpack.c.l.b16 %v2021
        %v2096 = vunpack.c.l.b16 %v2023
        %v2097 = vunpack.c.l.b16 %v2025
        %v2098 = vunpack.c.l.b16 %v2027
        %v2099 = vunpack.c.l.b16 %v2029
        %v2100 = vunpack.c.l.b16 %v2031
        %v2101 = vunpack.c.l.b16 %v2033
        %v2102 = vunpack.c.l.b16 %v2035
        %v2103 = vunpack.c.l.b16 %v2037
        %v2104 = vunpack.c.l.b16 %v2039
        %v2105 = vunpack.c.l.b16 %v2041
        %v2106 = vunpack.c.l.b16 %v2043
        %v2107 = vunpack.c.l.b16 %v2045
        %v2108 = vunpack.c.l.b16 %v2047
        %v2109 = vunpack.c.l.b16 %v2049
        %v2110 = vunpack.c.l.b16 %v2051
        %v2111 = vunpack.c.l.b16 %v2053
        %v2112 = vunpack.c.l.b16 %v2055
        %v2113 = vunpack.c.l.b16 %v2057
        %v2114 = vunpack.c.l.b16 %v2059
        %v2115 = vunpack.c.l.b16 %v2061
        %v2116 = vunpack.c.l.b16 %v2063
        %v2117 = vpack.c.b16 %v2094, %v2093
        %v2118 = vpack.c.b16 %v2096, %v2095
        %v2119 = vpack.c.b16 %v2098, %v2097
        %v2120 = vpack.c.b16 %v2100, %v2099
        %v2121 = vpack.c.b16 %v2102, %v2101
        %v2122 = vpack.c.b16 %v2104, %v2103
        %v2123 = vpack.c.b16 %v2106, %v2105
        %v2124 = vpack.c.b16 %v2108, %v2107
        %v2125 = vpack.c.b16 %v2110, %v2109
        %v2126 = vpack.c.b16 %v2112, %v2111
        %v2127 = vpack.c.b16 %v2114, %v2113
        %v2128 = vpack.c.b16 %v2116, %v2115
        %v2134 = vunpack.c.l.b16 %v2064
        %v2135 = vunpack.c.l.b16 %v2065
        %v2136 = vunpack.c.l.b16 %v2066
        %v2137 = vunpack.c.l.b16 %v2067
        %v2138 = vunpack.c.l.b16 %v2068
        %v2139 = vpack.c.b16 %v2135, %v2134
        %v2140 = vpack.c.b16 %v2137, %v2136
        %v2141 = vpack.c.b16 %v2138, %v2138
        %vm2144 = vcmask 293888
        %v2146 = vsel %vm2144, %v2117, 0
        %v2149 = vsel %vm2144, %v2118, 0
        %v2152 = vsel %vm2144, %v2119, 0
        %v2155 = vsel %vm2144, %v2120, 0
        %v2158 = vsel %vm2144, %v2121, 0
        %v2161 = vsel %vm2144, %v2122, 0
        %v2164 = vsel %vm2144, %v2123, 0
        %v2167 = vsel %vm2144, %v2124, 0
        %v2170 = vsel %vm2144, %v2125, 0
        %v2173 = vsel %vm2144, %v2126, 0
        %v2176 = vsel %vm2144, %v2127, 0
        %v2179 = vsel %vm2144, %v2128, 0
        %vm2181 = vcmask 1041408
        %v2183 = vsel %vm2181, %v2141, 0
        %2185 = vmatprep.subr.bf16.mxu0 0
        %2186 = vmatpush1.bf16.msra.mxu0 %v2139
        %2187 = vmatprep.subr.bf16.mxu0 0
        %2188 = vmatpush1.bf16.msra.mxu0 %v2140
        %2189 = vmatprep.subr.bf16.mxu0 0
        %2190 = vmatpush1.bf16.msra.mxu0 %v2183
        %2191 = vmatprep.subr.bf16.mxu0 0
        %2192 = vmatpush1.bf16.msra.mxu0 0
        %2193 = vmatprep.subr.bf16.mxu0 0
        %2194 = vmatpush1.bf16.msra.mxu0 0
        %2195 = vmatprep.subr.bf16.mxu0 0
        %2196 = vmatpush1.bf16.msra.mxu0 0
        %2197 = vmatprep.subr.bf16.mxu0 0
        %2198 = vmatpush1.bf16.msra.mxu0 0
        %2199 = vmatprep.subr.bf16.mxu0 0
        %2200 = vmatpush1.bf16.msra.mxu0 0
        %2201 = vmatprep.subr.bf16.mxu0 0
        %2202 = vmatpush1.bf16.msra.mxu0 0
        %2203 = vmatprep.subr.bf16.mxu0 0
        %2204 = vmatpush1.bf16.msra.mxu0 0
        %2205 = vmatprep.subr.bf16.mxu0 0
        %2206 = vmatpush1.bf16.msra.mxu0 0
        %2207 = vmatprep.subr.bf16.mxu0 0
        %2208 = vmatpush1.bf16.msra.mxu0 0
        %2209 = vmatprep.subr.bf16.mxu0 0
        %2210 = vmatpush1.bf16.msra.mxu0 0
        %2211 = vmatprep.subr.bf16.mxu0 0
        %2212 = vmatpush1.bf16.msra.mxu0 0
        %2213 = vmatprep.subr.bf16.mxu0 0
        %2214 = vmatpush1.bf16.msra.mxu0 0
        %2215 = vmatprep.subr.bf16.mxu0 0
        %2216 = vmatpush1.bf16.msra.mxu0 0
        %2217 = vmatprep.mubr.bf16.mxu0 0
        %2218 = vmatmul.mubr.bf16.gmra.mrb[0].mxu0 %v2146
        %v2219 = vpop.f32.mrb[0].mxu0
        %v2220 = vadd.f32 0.0, %v2219
        %v2221 = vpop.f32.mrb[0].mxu0
        %v2222 = vpop.f32.mrb[0].mxu0
        %v2223 = vadd.f32 0.0, %v2222
        %v2224 = vpop.f32.mrb[0].mxu0
        %2225 = vmatprep.mubr.bf16.mxu0 0
        %2226 = vmatmul.mubr.bf16.gmra.mrb[0].mxu0 %v2149
        %v2227 = vpop.f32.mrb[0].mxu0
        %v2228 = vadd.f32 0.0, %v2227
        %v2229 = vpop.f32.mrb[0].mxu0
        %v2230 = vpop.f32.mrb[0].mxu0
        %v2231 = vadd.f32 0.0, %v2230
        %v2232 = vpop.f32.mrb[0].mxu0
        %2233 = vmatprep.mubr.bf16.mxu0 0
        %2234 = vmatmul.mubr.bf16.gmra.mrb[0].mxu0 %v2152
        %v2235 = vpop.f32.mrb[0].mxu0
        %v2236 = vadd.f32 0.0, %v2235
        %v2237 = vpop.f32.mrb[0].mxu0
        %v2238 = vpop.f32.mrb[0].mxu0
        %v2239 = vadd.f32 0.0, %v2238
        %v2240 = vpop.f32.mrb[0].mxu0
        %2241 = vmatprep.mubr.bf16.mxu0 0
        %2242 = vmatmul.mubr.bf16.gmra.mrb[0].mxu0 %v2155
        %v2243 = vpop.f32.mrb[0].mxu0
        %v2244 = vadd.f32 0.0, %v2243
        %v2245 = vpop.f32.mrb[0].mxu0
        %v2246 = vpop.f32.mrb[0].mxu0
        %v2247 = vadd.f32 0.0, %v2246
        %v2248 = vpop.f32.mrb[0].mxu0
        %2249 = vmatprep.mubr.bf16.mxu0 0
        %2250 = vmatmul.mubr.bf16.gmra.mrb[0].mxu0 %v2158
        %v2251 = vpop.f32.mrb[0].mxu0
        %v2252 = vadd.f32 0.0, %v2251
        %v2253 = vpop.f32.mrb[0].mxu0
        %v2254 = vpop.f32.mrb[0].mxu0
        %v2255 = vadd.f32 0.0, %v2254
        %v2256 = vpop.f32.mrb[0].mxu0
        %2257 = vmatprep.mubr.bf16.mxu0 0
        %2258 = vmatmul.mubr.bf16.gmra.mrb[0].mxu0 %v2161
        %v2259 = vpop.f32.mrb[0].mxu0
        %v2260 = vadd.f32 0.0, %v2259
        %v2261 = vpop.f32.mrb[0].mxu0
        %v2262 = vpop.f32.mrb[0].mxu0
        %v2263 = vadd.f32 0.0, %v2262
        %v2264 = vpop.f32.mrb[0].mxu0
        %2265 = vmatprep.mubr.bf16.mxu0 0
        %2266 = vmatmul.mubr.bf16.gmra.mrb[0].mxu0 %v2164
        %v2267 = vpop.f32.mrb[0].mxu0
        %v2268 = vadd.f32 0.0, %v2267
        %v2269 = vpop.f32.mrb[0].mxu0
        %v2270 = vpop.f32.mrb[0].mxu0
        %v2271 = vadd.f32 0.0, %v2270
        %v2272 = vpop.f32.mrb[0].mxu0
        %2273 = vmatprep.mubr.bf16.mxu0 0
        %2274 = vmatmul.mubr.bf16.gmra.mrb[0].mxu0 %v2167
        %v2275 = vpop.f32.mrb[0].mxu0
        %v2276 = vadd.f32 0.0, %v2275
        %v2277 = vpop.f32.mrb[0].mxu0
        %v2278 = vpop.f32.mrb[0].mxu0
        %v2279 = vadd.f32 0.0, %v2278
        %v2280 = vpop.f32.mrb[0].mxu0
        %2281 = vmatprep.mubr.bf16.mxu0 0
        %2282 = vmatmul.mubr.bf16.gmra.mrb[0].mxu0 %v2170
        %v2283 = vpop.f32.mrb[0].mxu0
        %v2284 = vadd.f32 0.0, %v2283
        %v2285 = vpop.f32.mrb[0].mxu0
        %v2286 = vpop.f32.mrb[0].mxu0
        %v2287 = vadd.f32 0.0, %v2286
        %v2288 = vpop.f32.mrb[0].mxu0
        %2289 = vmatprep.mubr.bf16.mxu0 0
        %2290 = vmatmul.mubr.bf16.gmra.mrb[0].mxu0 %v2173
        %v2291 = vpop.f32.mrb[0].mxu0
        %v2292 = vadd.f32 0.0, %v2291
        %v2293 = vpop.f32.mrb[0].mxu0
        %v2294 = vpop.f32.mrb[0].mxu0
        %v2295 = vadd.f32 0.0, %v2294
        %v2296 = vpop.f32.mrb[0].mxu0
        %2297 = vmatprep.mubr.bf16.mxu0 0
        %2298 = vmatmul.mubr.bf16.gmra.mrb[0].mxu0 %v2176
        %v2299 = vpop.f32.mrb[0].mxu0
        %v2300 = vadd.f32 0.0, %v2299
        %v2301 = vpop.f32.mrb[0].mxu0
        %v2302 = vpop.f32.mrb[0].mxu0
        %v2303 = vadd.f32 0.0, %v2302
        %v2304 = vpop.f32.mrb[0].mxu0
        %2305 = vmatprep.mubr.bf16.mxu0 0
        %2306 = vmatmul.mubr.bf16.gmra.mrb[0].mxu0 %v2179
        %v2307 = vpop.f32.mrb[0].mxu0
        %v2308 = vadd.f32 0.0, %v2307
        %v2309 = vpop.f32.mrb[0].mxu0
        %v2310 = vpop.f32.mrb[0].mxu0
        %v2311 = vadd.f32 0.0, %v2310
        %v2312 = vpop.f32.mrb[0].mxu0
        %2313 = vdwg.mxu0
        %v2338 = vrot.slane %v2223, 7
        %vm2339 = vcmask 1041409
        %v2340 = vsel %vm2339, %v2338, %v2220
        %v2341 = vrot.slane %v2228, 6
        %vm2342 = vcmask 1042434
        %v2343 = vsel %vm2342, %v2341, %v2340
        %v2344 = vrot.slane %v2231, 5
        %vm2345 = vcmask 1043459
        %v2346 = vsel %vm2345, %v2344, %v2343
        %v2347 = vrot.slane %v2236, 4
        %vm2348 = vcmask 1044484
        %v2349 = vsel %vm2348, %v2347, %v2346
        %v2350 = vrot.slane %v2239, 3
        %vm2351 = vcmask 1045509
        %v2352 = vsel %vm2351, %v2350, %v2349
        %v2353 = vrot.slane %v2244, 2
        %vm2354 = vcmask 1046534
        %v2355 = vsel %vm2354, %v2353, %v2352
        %v2356 = vrot.slane %v2247, 1
        %vm2357 = vcmask 1047559
        %v2358 = vsel %vm2357, %v2356, %v2355
        %v2359 = vrot.slane %v2255, 7
        %v2360 = vsel %vm2339, %v2359, %v2252
        %v2361 = vrot.slane %v2260, 6
        %v2362 = vsel %vm2342, %v2361, %v2360
        %v2363 = vrot.slane %v2263, 5
        %v2364 = vsel %vm2345, %v2363, %v2362
        %v2365 = vrot.slane %v2268, 4
        %v2366 = vsel %vm2348, %v2365, %v2364
        %v2367 = vrot.slane %v2271, 3
        %v2368 = vsel %vm2351, %v2367, %v2366
        %v2369 = vrot.slane %v2276, 2
        %v2370 = vsel %vm2354, %v2369, %v2368
        %v2371 = vrot.slane %v2279, 1
        %v2372 = vsel %vm2357, %v2371, %v2370
        %v2373 = vrot.slane %v2287, 7
        %v2374 = vsel %vm2339, %v2373, %v2284
        %v2375 = vrot.slane %v2292, 6
        %v2376 = vsel %vm2342, %v2375, %v2374
        %v2377 = vrot.slane %v2295, 5
        %v2378 = vsel %vm2345, %v2377, %v2376
        %v2379 = vrot.slane %v2300, 4
        %v2380 = vsel %vm2348, %v2379, %v2378
        %v2381 = vrot.slane %v2303, 3
        %v2382 = vsel %vm2351, %v2381, %v2380
        %v2383 = vrot.slane %v2308, 2
        %v2384 = vsel %vm2354, %v2383, %v2382
        %v2385 = vrot.slane %v2311, 1
        %v2386 = vsel %vm2357, %v2385, %v2384
        %v2390 = vrot.slane %v2220, 1
        %v2391 = vsel %vm2339, %v2223, %v2390
        %v2392 = vrot.slane %v2228, 7
        %v2393 = vsel %vm2342, %v2392, %v2391
        %v2394 = vrot.slane %v2231, 6
        %v2395 = vsel %vm2345, %v2394, %v2393
        %v2396 = vrot.slane %v2236, 5
        %v2397 = vsel %vm2348, %v2396, %v2395
        %v2398 = vrot.slane %v2239, 4
        %v2399 = vsel %vm2351, %v2398, %v2397
        %v2400 = vrot.slane %v2244, 3
        %v2401 = vsel %vm2354, %v2400, %v2399
        %v2402 = vrot.slane %v2247, 2
        %v2403 = vsel %vm2357, %v2402, %v2401
        %v2404 = vrot.slane %v2252, 1
        %v2405 = vsel %vm2339, %v2255, %v2404
        %v2406 = vrot.slane %v2260, 7
        %v2407 = vsel %vm2342, %v2406, %v2405
        %v2408 = vrot.slane %v2263, 6
        %v2409 = vsel %vm2345, %v2408, %v2407
        %v2410 = vrot.slane %v2268, 5
        %v2411 = vsel %vm2348, %v2410, %v2409
        %v2412 = vrot.slane %v2271, 4
        %v2413 = vsel %vm2351, %v2412, %v2411
        %v2414 = vrot.slane %v2276, 3
        %v2415 = vsel %vm2354, %v2414, %v2413
        %v2416 = vrot.slane %v2279, 2
        %v2417 = vsel %vm2357, %v2416, %v2415
        %v2418 = vrot.slane %v2284, 1
        %v2419 = vsel %vm2339, %v2287, %v2418
        %v2420 = vrot.slane %v2292, 7
        %v2421 = vsel %vm2342, %v2420, %v2419
        %v2422 = vrot.slane %v2295, 6
        %v2423 = vsel %vm2345, %v2422, %v2421
        %v2424 = vrot.slane %v2300, 5
        %v2425 = vsel %vm2348, %v2424, %v2423
        %v2426 = vrot.slane %v2303, 4
        %v2427 = vsel %vm2351, %v2426, %v2425
        %v2428 = vrot.slane %v2308, 3
        %v2429 = vsel %vm2354, %v2428, %v2427
        %v2430 = vrot.slane %v2311, 2
        %v2431 = vsel %vm2357, %v2430, %v2429
        %2432 = vrot.lane.b32.xlu0 %v2403, 32
        %v2433 = vpop.permute.xlu0 %2432
        %2434 = vrot.lane.b32.xlu0 %v2417, 32
        %v2435 = vpop.permute.xlu0 %2434
        %2436 = vrot.lane.b32.xlu0 %v2431, 32
        %v2437 = vpop.permute.xlu0 %2436
        %v2441 = vrot.slane %v2220, 2
        %v2442 = vrot.slane %v2223, 1
        %v2443 = vsel %vm2339, %v2442, %v2441
        %v2444 = vsel %vm2342, %v2228, %v2443
        %v2445 = vrot.slane %v2231, 7
        %v2446 = vsel %vm2345, %v2445, %v2444
        %v2447 = vrot.slane %v2236, 6
        %v2448 = vsel %vm2348, %v2447, %v2446
        %v2449 = vrot.slane %v2239, 5
        %v2450 = vsel %vm2351, %v2449, %v2448
        %v2451 = vrot.slane %v2244, 4
        %v2452 = vsel %vm2354, %v2451, %v2450
        %v2453 = vrot.slane %v2247, 3
        %v2454 = vsel %vm2357, %v2453, %v2452
        %v2455 = vrot.slane %v2252, 2
        %v2456 = vrot.slane %v2255, 1
        %v2457 = vsel %vm2339, %v2456, %v2455
        %v2458 = vsel %vm2342, %v2260, %v2457
        %v2459 = vrot.slane %v2263, 7
        %v2460 = vsel %vm2345, %v2459, %v2458
        %v2461 = vrot.slane %v2268, 6
        %v2462 = vsel %vm2348, %v2461, %v2460
        %v2463 = vrot.slane %v2271, 5
        %v2464 = vsel %vm2351, %v2463, %v2462
        %v2465 = vrot.slane %v2276, 4
        %v2466 = vsel %vm2354, %v2465, %v2464
        %v2467 = vrot.slane %v2279, 3
        %v2468 = vsel %vm2357, %v2467, %v2466
        %v2469 = vrot.slane %v2284, 2
        %v2470 = vrot.slane %v2287, 1
        %v2471 = vsel %vm2339, %v2470, %v2469
        %v2472 = vsel %vm2342, %v2292, %v2471
        %v2473 = vrot.slane %v2295, 7
        %v2474 = vsel %vm2345, %v2473, %v2472
        %v2475 = vrot.slane %v2300, 6
        %v2476 = vsel %vm2348, %v2475, %v2474
        %v2477 = vrot.slane %v2303, 5
        %v2478 = vsel %vm2351, %v2477, %v2476
        %v2479 = vrot.slane %v2308, 4
        %v2480 = vsel %vm2354, %v2479, %v2478
        %v2481 = vrot.slane %v2311, 3
        %v2482 = vsel %vm2357, %v2481, %v2480
        %2483 = vrot.lane.b32.xlu0 %v2454, 64
        %v2484 = vpop.permute.xlu0 %2483
        %2485 = vrot.lane.b32.xlu0 %v2468, 64
        %v2486 = vpop.permute.xlu0 %2485
        %2487 = vrot.lane.b32.xlu0 %v2482, 64
        %v2488 = vpop.permute.xlu0 %2487
        %v2492 = vrot.slane %v2220, 3
        %v2493 = vrot.slane %v2223, 2
        %v2494 = vsel %vm2339, %v2493, %v2492
        %v2495 = vrot.slane %v2228, 1
        %v2496 = vsel %vm2342, %v2495, %v2494
        %v2497 = vsel %vm2345, %v2231, %v2496
        %v2498 = vrot.slane %v2236, 7
        %v2499 = vsel %vm2348, %v2498, %v2497
        %v2500 = vrot.slane %v2239, 6
        %v2501 = vsel %vm2351, %v2500, %v2499
        %v2502 = vrot.slane %v2244, 5
        %v2503 = vsel %vm2354, %v2502, %v2501
        %v2504 = vrot.slane %v2247, 4
        %v2505 = vsel %vm2357, %v2504, %v2503
        %v2506 = vrot.slane %v2252, 3
        %v2507 = vrot.slane %v2255, 2
        %v2508 = vsel %vm2339, %v2507, %v2506
        %v2509 = vrot.slane %v2260, 1
        %v2510 = vsel %vm2342, %v2509, %v2508
        %v2511 = vsel %vm2345, %v2263, %v2510
        %v2512 = vrot.slane %v2268, 7
        %v2513 = vsel %vm2348, %v2512, %v2511
        %v2514 = vrot.slane %v2271, 6
        %v2515 = vsel %vm2351, %v2514, %v2513
        %v2516 = vrot.slane %v2276, 5
        %v2517 = vsel %vm2354, %v2516, %v2515
        %v2518 = vrot.slane %v2279, 4
        %v2519 = vsel %vm2357, %v2518, %v2517
        %v2520 = vrot.slane %v2284, 3
        %v2521 = vrot.slane %v2287, 2
        %v2522 = vsel %vm2339, %v2521, %v2520
        %v2523 = vrot.slane %v2292, 1
        %v2524 = vsel %vm2342, %v2523, %v2522
        %v2525 = vsel %vm2345, %v2295, %v2524
        %v2526 = vrot.slane %v2300, 7
        %v2527 = vsel %vm2348, %v2526, %v2525
        %v2528 = vrot.slane %v2303, 6
        %v2529 = vsel %vm2351, %v2528, %v2527
        %v2530 = vrot.slane %v2308, 5
        %v2531 = vsel %vm2354, %v2530, %v2529
        %v2532 = vrot.slane %v2311, 4
        %v2533 = vsel %vm2357, %v2532, %v2531
        %2534 = vrot.lane.b32.xlu0 %v2505, 96
        %v2535 = vpop.permute.xlu0 %2534
        %2536 = vrot.lane.b32.xlu0 %v2519, 96
        %v2537 = vpop.permute.xlu0 %2536
        %2538 = vrot.lane.b32.xlu0 %v2533, 96
        %v2539 = vpop.permute.xlu0 %2538
        %v2543 = vrot.slane %v2220, 4
        %v2544 = vrot.slane %v2223, 3
        %v2545 = vsel %vm2339, %v2544, %v2543
        %v2546 = vrot.slane %v2228, 2
        %v2547 = vsel %vm2342, %v2546, %v2545
        %v2548 = vrot.slane %v2231, 1
        %v2549 = vsel %vm2345, %v2548, %v2547
        %v2550 = vsel %vm2348, %v2236, %v2549
        %v2551 = vrot.slane %v2239, 7
        %v2552 = vsel %vm2351, %v2551, %v2550
        %v2553 = vrot.slane %v2244, 6
        %v2554 = vsel %vm2354, %v2553, %v2552
        %v2555 = vrot.slane %v2247, 5
        %v2556 = vsel %vm2357, %v2555, %v2554
        %v2557 = vrot.slane %v2252, 4
        %v2558 = vrot.slane %v2255, 3
        %v2559 = vsel %vm2339, %v2558, %v2557
        %v2560 = vrot.slane %v2260, 2
        %v2561 = vsel %vm2342, %v2560, %v2559
        %v2562 = vrot.slane %v2263, 1
        %v2563 = vsel %vm2345, %v2562, %v2561
        %v2564 = vsel %vm2348, %v2268, %v2563
        %v2565 = vrot.slane %v2271, 7
        %v2566 = vsel %vm2351, %v2565, %v2564
        %v2567 = vrot.slane %v2276, 6
        %v2568 = vsel %vm2354, %v2567, %v2566
        %v2569 = vrot.slane %v2279, 5
        %v2570 = vsel %vm2357, %v2569, %v2568
        %v2571 = vrot.slane %v2284, 4
        %v2572 = vrot.slane %v2287, 3
        %v2573 = vsel %vm2339, %v2572, %v2571
        %v2574 = vrot.slane %v2292, 2
        %v2575 = vsel %vm2342, %v2574, %v2573
        %v2576 = vrot.slane %v2295, 1
        %v2577 = vsel %vm2345, %v2576, %v2575
        %v2578 = vsel %vm2348, %v2300, %v2577
        %v2579 = vrot.slane %v2303, 7
        %v2580 = vsel %vm2351, %v2579, %v2578
        %v2581 = vrot.slane %v2308, 6
        %v2582 = vsel %vm2354, %v2581, %v2580
        %v2583 = vrot.slane %v2311, 5
        %v2584 = vsel %vm2357, %v2583, %v2582
        %v2588 = vrot.slane %v2220, 5
        %v2589 = vrot.slane %v2223, 4
        %v2590 = vsel %vm2339, %v2589, %v2588
        %v2591 = vrot.slane %v2228, 3
        %v2592 = vsel %vm2342, %v2591, %v2590
        %v2593 = vrot.slane %v2231, 2
        %v2594 = vsel %vm2345, %v2593, %v2592
        %v2595 = vrot.slane %v2236, 1
        %v2596 = vsel %vm2348, %v2595, %v2594
        %v2597 = vsel %vm2351, %v2239, %v2596
        %v2598 = vrot.slane %v2244, 7
        %v2599 = vsel %vm2354, %v2598, %v2597
        %v2600 = vrot.slane %v2247, 6
        %v2601 = vsel %vm2357, %v2600, %v2599
        %v2602 = vrot.slane %v2252, 5
        %v2603 = vrot.slane %v2255, 4
        %v2604 = vsel %vm2339, %v2603, %v2602
        %v2605 = vrot.slane %v2260, 3
        %v2606 = vsel %vm2342, %v2605, %v2604
        %v2607 = vrot.slane %v2263, 2
        %v2608 = vsel %vm2345, %v2607, %v2606
        %v2609 = vrot.slane %v2268, 1
        %v2610 = vsel %vm2348, %v2609, %v2608
        %v2611 = vsel %vm2351, %v2271, %v2610
        %v2612 = vrot.slane %v2276, 7
        %v2613 = vsel %vm2354, %v2612, %v2611
        %v2614 = vrot.slane %v2279, 6
        %v2615 = vsel %vm2357, %v2614, %v2613
        %v2616 = vrot.slane %v2284, 5
        %v2617 = vrot.slane %v2287, 4
        %v2618 = vsel %vm2339, %v2617, %v2616
        %v2619 = vrot.slane %v2292, 3
        %v2620 = vsel %vm2342, %v2619, %v2618
        %v2621 = vrot.slane %v2295, 2
        %v2622 = vsel %vm2345, %v2621, %v2620
        %v2623 = vrot.slane %v2300, 1
        %v2624 = vsel %vm2348, %v2623, %v2622
        %v2625 = vsel %vm2351, %v2303, %v2624
        %v2626 = vrot.slane %v2308, 7
        %v2627 = vsel %vm2354, %v2626, %v2625
        %v2628 = vrot.slane %v2311, 6
        %v2629 = vsel %vm2357, %v2628, %v2627
        %2630 = vrot.lane.b32.xlu0 %v2601, 32
        %v2631 = vpop.permute.xlu0 %2630
        %2632 = vrot.lane.b32.xlu0 %v2615, 32
        %v2633 = vpop.permute.xlu0 %2632
        %2634 = vrot.lane.b32.xlu0 %v2629, 32
        %v2635 = vpop.permute.xlu0 %2634
        %v2639 = vrot.slane %v2220, 6
        %v2640 = vrot.slane %v2223, 5
        %v2641 = vsel %vm2339, %v2640, %v2639
        %v2642 = vrot.slane %v2228, 4
        %v2643 = vsel %vm2342, %v2642, %v2641
        %v2644 = vrot.slane %v2231, 3
        %v2645 = vsel %vm2345, %v2644, %v2643
        %v2646 = vrot.slane %v2236, 2
        %v2647 = vsel %vm2348, %v2646, %v2645
        %v2648 = vrot.slane %v2239, 1
        %v2649 = vsel %vm2351, %v2648, %v2647
        %v2650 = vsel %vm2354, %v2244, %v2649
        %v2651 = vrot.slane %v2247, 7
        %v2652 = vsel %vm2357, %v2651, %v2650
        %v2653 = vrot.slane %v2252, 6
        %v2654 = vrot.slane %v2255, 5
        %v2655 = vsel %vm2339, %v2654, %v2653
        %v2656 = vrot.slane %v2260, 4
        %v2657 = vsel %vm2342, %v2656, %v2655
        %v2658 = vrot.slane %v2263, 3
        %v2659 = vsel %vm2345, %v2658, %v2657
        %v2660 = vrot.slane %v2268, 2
        %v2661 = vsel %vm2348, %v2660, %v2659
        %v2662 = vrot.slane %v2271, 1
        %v2663 = vsel %vm2351, %v2662, %v2661
        %v2664 = vsel %vm2354, %v2276, %v2663
        %v2665 = vrot.slane %v2279, 7
        %v2666 = vsel %vm2357, %v2665, %v2664
        %v2667 = vrot.slane %v2284, 6
        %v2668 = vrot.slane %v2287, 5
        %v2669 = vsel %vm2339, %v2668, %v2667
        %v2670 = vrot.slane %v2292, 4
        %v2671 = vsel %vm2342, %v2670, %v2669
        %v2672 = vrot.slane %v2295, 3
        %v2673 = vsel %vm2345, %v2672, %v2671
        %v2674 = vrot.slane %v2300, 2
        %v2675 = vsel %vm2348, %v2674, %v2673
        %v2676 = vrot.slane %v2303, 1
        %v2677 = vsel %vm2351, %v2676, %v2675
        %v2678 = vsel %vm2354, %v2308, %v2677
        %v2679 = vrot.slane %v2311, 7
        %v2680 = vsel %vm2357, %v2679, %v2678
        %2681 = vrot.lane.b32.xlu0 %v2652, 64
        %v2682 = vpop.permute.xlu0 %2681
        %2683 = vrot.lane.b32.xlu0 %v2666, 64
        %v2684 = vpop.permute.xlu0 %2683
        %2685 = vrot.lane.b32.xlu0 %v2680, 64
        %v2686 = vpop.permute.xlu0 %2685
        %v2690 = vrot.slane %v2220, 7
        %v2691 = vrot.slane %v2223, 6
        %v2692 = vsel %vm2339, %v2691, %v2690
        %v2693 = vrot.slane %v2228, 5
        %v2694 = vsel %vm2342, %v2693, %v2692
        %v2695 = vrot.slane %v2231, 4
        %v2696 = vsel %vm2345, %v2695, %v2694
        %v2697 = vrot.slane %v2236, 3
        %v2698 = vsel %vm2348, %v2697, %v2696
        %v2699 = vrot.slane %v2239, 2
        %v2700 = vsel %vm2351, %v2699, %v2698
        %v2701 = vrot.slane %v2244, 1
        %v2702 = vsel %vm2354, %v2701, %v2700
        %v2703 = vsel %vm2357, %v2247, %v2702
        %v2704 = vrot.slane %v2252, 7
        %v2705 = vrot.slane %v2255, 6
        %v2706 = vsel %vm2339, %v2705, %v2704
        %v2707 = vrot.slane %v2260, 5
        %v2708 = vsel %vm2342, %v2707, %v2706
        %v2709 = vrot.slane %v2263, 4
        %v2710 = vsel %vm2345, %v2709, %v2708
        %v2711 = vrot.slane %v2268, 3
        %v2712 = vsel %vm2348, %v2711, %v2710
        %v2713 = vrot.slane %v2271, 2
        %v2714 = vsel %vm2351, %v2713, %v2712
        %v2715 = vrot.slane %v2276, 1
        %v2716 = vsel %vm2354, %v2715, %v2714
        %v2717 = vsel %vm2357, %v2279, %v2716
        %v2718 = vrot.slane %v2284, 7
        %v2719 = vrot.slane %v2287, 6
        %v2720 = vsel %vm2339, %v2719, %v2718
        %v2721 = vrot.slane %v2292, 5
        %v2722 = vsel %vm2342, %v2721, %v2720
        %v2723 = vrot.slane %v2295, 4
        %v2724 = vsel %vm2345, %v2723, %v2722
        %v2725 = vrot.slane %v2300, 3
        %v2726 = vsel %vm2348, %v2725, %v2724
        %v2727 = vrot.slane %v2303, 2
        %v2728 = vsel %vm2351, %v2727, %v2726
        %v2729 = vrot.slane %v2308, 1
        %v2730 = vsel %vm2354, %v2729, %v2728
        %v2731 = vsel %vm2357, %v2311, %v2730
        %2732 = vrot.lane.b32.xlu0 %v2703, 96
        %v2733 = vpop.permute.xlu0 %2732
        %2734 = vrot.lane.b32.xlu0 %v2717, 96
        %v2735 = vpop.permute.xlu0 %2734
        %2736 = vrot.lane.b32.xlu0 %v2731, 96
        %v2737 = vpop.permute.xlu0 %2736
        %v2741 = vsel %vm2015, %v2358, %v2433
        %v2742 = vsel %vm2015, %v2372, %v2435
        %v2743 = vsel %vm2015, %v2386, %v2437
        %vm2744 = vcmask 523264
        %v2745 = vsel %vm2744, %v2741, %v2484
        %v2746 = vsel %vm2744, %v2742, %v2486
        %v2747 = vsel %vm2744, %v2743, %v2488
        %vm2748 = vcmask 785408
        %v2749 = vsel %vm2748, %v2745, %v2535
        %v2750 = vsel %vm2748, %v2746, %v2537
        %v2751 = vsel %vm2748, %v2747, %v2539
        %v2752 = vsel %vm2015, %v2556, %v2631
        %v2753 = vsel %vm2015, %v2570, %v2633
        %v2754 = vsel %vm2015, %v2584, %v2635
        %v2755 = vsel %vm2744, %v2752, %v2682
        %v2756 = vsel %vm2744, %v2753, %v2684
        %v2757 = vsel %vm2744, %v2754, %v2686
        %v2758 = vsel %vm2748, %v2755, %v2733
        %v2759 = vsel %vm2748, %v2756, %v2735
        %v2760 = vsel %vm2748, %v2757, %v2737
        %v2761 = vld [vmem:[%s2] sm:$0x3]
        %v2763 = vlaneseq
        %v2764 = vshrl.u32 %v2763, 7
        %v2765 = vsub.s32 0, %v2764
        %v2766 = vrot.slane %v2761, %v2765
        %v2767 = vlaneseq
        %v2768 = vshrl.u32 %v2767, 7
        %v2769 = vsub.s32 1, %v2768
        %v2770 = vrot.slane %v2761, %v2769
        %v2773 = vadd.f32 %v2749, %v2766
        %v2774 = vadd.f32 %v2758, %v2770
        %v2775 = vadd.f32 %v2750, %v2766
        %v2776 = vadd.f32 %v2759, %v2770
        %v2777 = vadd.f32 %v2751, %v2766
        %v2778 = vadd.f32 %v2760, %v2770
        %v2779 = vmax.f32 %v2773, 0.0
        %v2780 = vmax.f32 %v2774, 0.0
        %v2781 = vmax.f32 %v2775, 0.0
        %v2782 = vmax.f32 %v2776, 0.0
        %v2783 = vmax.f32 %v2777, 0.0
        %v2784 = vmax.f32 %v2778, 0.0
        %2785 = vst [vmem:[%s166] sm:$0xff] %v2779
        %2786 = vst [vmem:[%s166 + $0x8] sm:$0xff] %v2780
        %2787 = vst [vmem:[%s166 + $0x10] sm:$0xff] %v2781
        %2788 = vst [vmem:[%s166 + $0x18] sm:$0xff] %v2782
        %2789 = vst [vmem:[%s166 + $0x20] sm:$0xff] %v2783
        %2790 = vst [vmem:[%s166 + $0x28] sm:$0xff] %v2784
        %s2791 = sand.u32 %s93, 1
        %s2792 = scalar_lea.sflag [#allocation4], %s2791
        %s2793 = sand.u32 %s93, 1
        %s2794 = smul.addr %s2793, 48
        %s2795 = scalar_lea.vmem [#allocation3], %s2794
        // Predicated region
        $region33: #{tpu_custom_call.1} parent=31 // pred_check
          %p2796 = pneg %p103
        $region34: #{tpu_custom_call.1} parent=31 // pred_check_branch
          %2798 = sbr.rel (%p2796) target = $region36
        $region35: #{tpu_custom_call.1} parent=31 // pred_region
          %s2799 = smul.u32 3, %s17
          %s2801 = ssub.s32 768, 768
          %2802 = vsyncadd %s2792, %s2801
          %s2803 = smul.addr %s2799, 2
          %s2804 = smul.addr %s2803, 128
          %s2805 = scalar_lea.hbm %s3, %s2804
          %s2806 = sshll.u32 %s2795, 4
          %s2807 = int_to_ptr.vmem [resolvable:$true] %s2806
          %2812 = dma.vmem_to_hbm [thread:$0]  %s2807, 768, %s2805, %s2792, 256, 256, 16
        $region36: #{tpu_custom_call.1} parent=31 // pred_fallthru
          _
      $region32: #{tpu_custom_call.1} parent=5 // pred_fallthru
        _
      %p2813 = scmp.le.s32.totalorder 2, %s12
      // Predicated region
      $region37: #{tpu_custom_call.1} parent=5 // pred_check
        %p2814 = pneg %p2813
      $region38: #{tpu_custom_call.1} parent=5 // pred_check_branch
        %2816 = sbr.rel (%p2814) target = $region40
      $region39: #{tpu_custom_call.1} parent=5 // pred_region
        %s2817 = ssub.s32 %s12, 2
        // Predicated region
        $region41: #{tpu_custom_call.1} parent=39 // pred_check
          %p2818 = pneg %p109
        $region42: #{tpu_custom_call.1} parent=39 // pred_check_branch
          %2820 = sbr.rel (%p2818) target = $region44
        $region43: #{tpu_custom_call.1} parent=39 // pred_region
          %s2821 = sand.u32 %s94, 1
          %s2822 = scalar_lea.sflag [#allocation4], %s2821
          %s2823 = sand.u32 %s94, 1
          %s2824 = smul.addr %s2823, 48
          %s2825 = scalar_lea.vmem [#allocation3], %s2824
          %2826 = dma.done %s2822, 768
        $region44: #{tpu_custom_call.1} parent=39 // pred_fallthru
          _
      $region40: #{tpu_custom_call.1} parent=5 // pred_fallthru
        _
    $region6: #{tpu_custom_call.1} parent=1 // loop_footer
      %s16 = sadd.s32 1, %s12
    $region7: #{tpu_custom_call.1} parent=1 // loop_footer_branch
      %11 = sbr.rel target = $region3
    $region8: #{tpu_custom_call.1} parent=1 // loop_exit
      _
    %2827 = vsyncpa [#allocation4], 1
    %s2828 = scalar_lea.sflag [#allocation4], 1
    %2829 = vsyncpa %s2828, 1

</llo_original>
